<compile_context>
chip_gen: v6e
topology: v6e:2x2x1
jax: 0.10.0
libtpu: 0.0.40
codegen_flags: <defaults>
</compile_context>

<pallas_src>
import functools
import math

import jax
import jax.numpy as jnp
from jax import lax
from jax.experimental import pallas as pl
from jax.experimental.pallas import tpu as pltpu


def _gelu(x):
    # BERT gelu (tanh approximation).
    # TODO(synk): HF's default "gelu" is the exact erf-based GELU; erf lowering
    # in Mosaic is not guaranteed, so the tanh approximation is used here.
    return 0.5 * x * (1.0 + jnp.tanh(0.7978845608028654 * (x + 0.044715 * x * x * x)))


def _layernorm(x, g, b, eps=1e-12):
    mu = jnp.mean(x, axis=-1, keepdims=True)
    var = jnp.mean((x - mu) ** 2, axis=-1, keepdims=True)
    return (x - mu) * lax.rsqrt(var + eps) * g + b


def pp_bert_encoder_kernel(x_ref, mask_ref,
                           wqkv_ref, bqkv_ref, wo_ref, bo_ref,
                           ln1g_ref, ln1b_ref,
                           wi_ref, bi_ref, wo2_ref, bo2_ref,
                           ln2g_ref, ln2b_ref,
                           out_ref, ctx_ref, *, num_heads, ffn_chunk):
    l = pl.program_id(1)

    # First layer for this batch block: seed the resident carry with the input.
    @pl.when(l == 0)
    def _():
        out_ref[...] = x_ref[...]

    h3 = out_ref[...]                      # (bb, S, H) f32, resident across layers
    bb, S, H = h3.shape
    T = bb * S
    nh = num_heads
    dh = H // nh
    scale = 1.0 / math.sqrt(dh)

    h = h3.reshape(T, H)                   # flatten batch block -> taller MXU M dim
    h_bf = h.astype(jnp.bfloat16)

    # --- Self-attention: fused QKV projection (bf16 operands, f32 accumulation) ---
    qkv = jnp.dot(h_bf, wqkv_ref[...],
                  preferred_element_type=jnp.float32) + bqkv_ref[...]
    q = (qkv[:, :H] * scale).astype(jnp.bfloat16).reshape(bb, S, H)  # fold 1/sqrt(dh)
    k = qkv[:, H:2 * H].astype(jnp.bfloat16).reshape(bb, S, H)
    v = qkv[:, 2 * H:].astype(jnp.bfloat16).reshape(bb, S, H)

    # Hoist the additive-mask broadcast out of the per-head loop
    # (JAX does not CSE broadcast_in_dim).
    mask_b = jnp.broadcast_to(mask_ref[...], (bb, S, S))   # (bb, S, S) f32

    # Per-head attention, batched over the bb batch rows (unrolled over heads at
    # trace time). Each head's context goes straight into a bf16 VMEM scratch.
    for hd in range(nh):
        sl = slice(hd * dh, (hd + 1) * dh)
        scores = jnp.einsum('bqd,bkd->bqk', q[:, :, sl], k[:, :, sl],
                            preferred_element_type=jnp.float32) + mask_b
        scores = scores - jnp.max(scores, axis=-1, keepdims=True)
        p = jnp.exp(scores)
        inv = pl.reciprocal(jnp.sum(p, axis=-1, keepdims=True), approx=True)
        p = (p * inv).astype(jnp.bfloat16)
        ctx_ref[:, :, sl] = jnp.einsum(
            'bqk,bkd->bqd', p, v[:, :, sl],
            preferred_element_type=jnp.float32).astype(jnp.bfloat16)

    ctx = ctx_ref[...].reshape(T, H)                        # (T, H) bf16

    # BertSelfOutput: dense + (dropout = identity) + LayerNorm(residual)
    attn = jnp.dot(ctx, wo_ref[...], preferred_element_type=jnp.float32) + bo_ref[...]
    y = _layernorm(attn + h, ln1g_ref[...], ln1b_ref[...])
    y_bf = y.astype(jnp.bfloat16)

    # BertIntermediate + BertOutput, chunked along the intermediate dim so the
    # full (T, I) f32 activation is never materialized.
    I = wi_ref.shape[1]
    ffn = jnp.zeros((T, H), jnp.float32)
    for c0 in range(0, I, ffn_chunk):
        c1 = min(c0 + ffn_chunk, I)
        inter = _gelu(jnp.dot(y_bf, wi_ref[:, c0:c1],
                              preferred_element_type=jnp.float32) + bi_ref[:, c0:c1])
        ffn = ffn + jnp.dot(inter.astype(jnp.bfloat16), wo2_ref[c0:c1, :],
                            preferred_element_type=jnp.float32)
    ffn = ffn + bo2_ref[...]
    out = _layernorm(ffn + y, ln2g_ref[...], ln2b_ref[...])
    out_ref[...] = out.reshape(bb, S, H)


def _vmem_limit_bytes():
    # ~75% of physical VMEM (48 MiB on v7x, 96 MiB on v5e/v6e), capped at 112 MiB.
    try:
        cap = pltpu.get_tpu_info().vmem_capacity_bytes
    except Exception:
        cap = 128 * 1024 * 1024
    return int(min(cap * 3 // 4, 112 * 1024 * 1024))


def _pick_batch_block(B, S, H, vmem_limit, weight_bytes_per_layer):
    """Largest divisor of B whose activation working set fits the VMEM budget."""
    act_budget = max(vmem_limit - 2 * weight_bytes_per_layer, 4 * 1024 * 1024)
    per_row = 4 * S * (8 * H + S + 512)          # rough f32 working set per batch row
    bb = max(1, min(B, act_budget // max(per_row, 1)))
    while B % bb:
        bb -= 1
    return bb


def pp_bert_encoder(hidden_states, attention_mask, layer_params, num_heads):
    """PPBertEncoder.forward: all BertLayers fused into one pallas_call."""
    B, S, H = hidden_states.shape
    L = len(layer_params)
    I = layer_params[0]["wi"].shape[1]
    assert H % num_heads == 0

    # BERT-style extended additive mask [B, 1, 1, S] -> [B, 1, S].
    mask3 = attention_mask.reshape(B, 1, S).astype(jnp.float32)

    def stack(name, dtype):
        return jnp.stack([p[name] for p in layer_params]).astype(dtype)

    # Fused QKV weight / bias; matmul weights live in HBM as bf16 (halves DMA
    # bytes / VMEM footprint), biases and LayerNorm params stay f32.
    wqkv = jnp.stack([jnp.concatenate([p["wq"], p["wk"], p["wv"]], axis=1)
                      for p in layer_params]).astype(jnp.bfloat16)      # (L, H, 3H)
    bqkv = jnp.stack([jnp.concatenate([p["bq"], p["bk"], p["bv"]], axis=1)
                      for p in layer_params]).astype(jnp.float32)       # (L, 1, 3H)
    wo = stack("wo", jnp.bfloat16)
    bo = stack("bo", jnp.float32)
    wi = stack("wi", jnp.bfloat16)
    bi = stack("bi", jnp.float32)
    wo2 = stack("wo2", jnp.bfloat16)
    bo2 = stack("bo2", jnp.float32)
    ln1g = stack("ln1_g", jnp.float32)
    ln1b = stack("ln1_b", jnp.float32)
    ln2g = stack("ln2_g", jnp.float32)
    ln2b = stack("ln2_b", jnp.float32)

    vmem_limit = _vmem_limit_bytes()
    weight_bytes_per_layer = 2 * (3 * H * H + H * H + 2 * H * I) + 4 * (8 * H + I)
    bb = _pick_batch_block(B, S, H, vmem_limit, weight_bytes_per_layer)
    ffn_chunk = min(I, 512)

    def w_spec(*shape):
        # Per-layer weight block: index only along the layer axis.
        return pl.BlockSpec((None,) + shape, lambda b, l: (l,) + (0,) * len(shape))

    in_specs = [
        pl.BlockSpec((bb, S, H), lambda b, l: (b, 0, 0)),   # hidden (read at l==0)
        pl.BlockSpec((bb, 1, S), lambda b, l: (b, 0, 0)),   # additive mask
        w_spec(H, 3 * H), w_spec(1, 3 * H),    # wqkv, bqkv
        w_spec(H, H), w_spec(1, H),            # wo, bo
        w_spec(1, H), w_spec(1, H),            # ln1 gamma / beta
        w_spec(H, I), w_spec(1, I),            # wi, bi
        w_spec(I, H), w_spec(1, H),            # wo2, bo2
        w_spec(1, H), w_spec(1, H),            # ln2 gamma / beta
    ]

    kernel = functools.partial(pp_bert_encoder_kernel,
                               num_heads=num_heads, ffn_chunk=ffn_chunk)
    return pl.pallas_call(
        kernel,
        out_shape=jax.ShapeDtypeStruct((B, S, H), jnp.float32),
        grid=(B // bb, L),                                   # batch blocks outer, l inner
        in_specs=in_specs,
        out_specs=pl.BlockSpec((bb, S, H), lambda b, l: (b, 0, 0)),
        scratch_shapes=[pltpu.VMEM((bb, S, H), jnp.bfloat16)],  # per-head ctx assembly
        compiler_params=pltpu.CompilerParams(
            dimension_semantics=("parallel", "arbitrary"),
            vmem_limit_bytes=vmem_limit),
    )(hidden_states, mask3,
      wqkv, bqkv, wo, bo, ln1g, ln1b,
      wi, bi, wo2, bo2, ln2g, ln2b)


def init_layer_params(key, H, I):
    ks = jax.random.split(key, 6)
    std = 0.02
    return {
        "wq": jax.random.normal(ks[0], (H, H), jnp.float32) * std,
        "bq": jnp.zeros((1, H), jnp.float32),
        "wk": jax.random.normal(ks[1], (H, H), jnp.float32) * std,
        "bk": jnp.zeros((1, H), jnp.float32),
        "wv": jax.random.normal(ks[2], (H, H), jnp.float32) * std,
        "bv": jnp.zeros((1, H), jnp.float32),
        "wo": jax.random.normal(ks[3], (H, H), jnp.float32) * std,
        "bo": jnp.zeros((1, H), jnp.float32),
        "ln1_g": jnp.ones((1, H), jnp.float32),
        "ln1_b": jnp.zeros((1, H), jnp.float32),
        "wi": jax.random.normal(ks[4], (H, I), jnp.float32) * std,
        "bi": jnp.zeros((1, I), jnp.float32),
        "wo2": jax.random.normal(ks[5], (I, H), jnp.float32) * std,
        "bo2": jnp.zeros((1, H), jnp.float32),
        "ln2_g": jnp.ones((1, H), jnp.float32),
        "ln2_b": jnp.zeros((1, H), jnp.float32),
    }


if __name__ == "__main__":
    B, S, H = 2, 8, 32
    NUM_HEADS = 4
    INTERMEDIATE = 64
    NUM_PP_HIDDEN_LAYERS = 2

    root = jax.random.PRNGKey(0)
    k_hidden, k_params = jax.random.split(root)

    hidden_states = jax.random.normal(k_hidden, (B, S, H), jnp.float32)

    # Binary padding mask -> BERT extended additive mask [B, 1, 1, S].
    binary_mask = jnp.ones((B, S), jnp.float32).at[1, 6:].set(0.0)
    attention_mask = (1.0 - binary_mask)[:, None, None, :] * -10000.0

    layer_keys = jax.random.split(k_params, NUM_PP_HIDDEN_LAYERS)
    layer_params = [init_layer_params(k, H, INTERMEDIATE) for k in layer_keys]

    out = pp_bert_encoder(hidden_states, attention_mask, layer_params, NUM_HEADS)
    out = jax.block_until_ready(out)
    assert out.shape == (B, S, H) and out.dtype == jnp.float32
    assert bool(jnp.all(jnp.isfinite(out)))
    print("KERNEL_OK")
</pallas_src>

<mosaic_0001>
module attributes {stable_mosaic.version = 11 : i64} {
  func.func @pp_bert_encoder_kernel(%arg0: i32, %arg1: i32, %arg2: memref<2x8x32xf32, #tpu.memory_space<vmem>>, %arg3: memref<2x1x8xf32, #tpu.memory_space<vmem>>, %arg4: memref<1x32x96xbf16, #tpu.memory_space<vmem>>, %arg5: memref<1x1x96xf32, #tpu.memory_space<vmem>>, %arg6: memref<1x32x32xbf16, #tpu.memory_space<vmem>>, %arg7: memref<1x1x32xf32, #tpu.memory_space<vmem>>, %arg8: memref<1x1x32xf32, #tpu.memory_space<vmem>>, %arg9: memref<1x1x32xf32, #tpu.memory_space<vmem>>, %arg10: memref<1x32x64xbf16, #tpu.memory_space<vmem>>, %arg11: memref<1x1x64xf32, #tpu.memory_space<vmem>>, %arg12: memref<1x64x32xbf16, #tpu.memory_space<vmem>>, %arg13: memref<1x1x32xf32, #tpu.memory_space<vmem>>, %arg14: memref<1x1x32xf32, #tpu.memory_space<vmem>>, %arg15: memref<1x1x32xf32, #tpu.memory_space<vmem>>, %arg16: memref<2x8x32xf32, #tpu.memory_space<vmem>>, %arg17: memref<2x8x32xbf16, #tpu.memory_space<vmem>>) attributes {dimension_semantics = [#tpu.dimension_semantics<parallel>, #tpu.dimension_semantics<arbitrary>], iteration_bounds = array<i64: 1, 2>, scalar_prefetch = 0 : i64, scratch_operands = 1 : i64, tpu.core_type = #tpu.core_type<tc>, window_params = [{transform_indices = @transform_0, window_bounds = array<i64: 2, 8, 32>}, {transform_indices = @transform_1, window_bounds = array<i64: 2, 1, 8>}, {transform_indices = @transform_2, window_bounds = array<i64: 1, 32, 96>}, {transform_indices = @transform_3, window_bounds = array<i64: 1, 1, 96>}, {transform_indices = @transform_4, window_bounds = array<i64: 1, 32, 32>}, {transform_indices = @transform_5, window_bounds = array<i64: 1, 1, 32>}, {transform_indices = @transform_6, window_bounds = array<i64: 1, 1, 32>}, {transform_indices = @transform_7, window_bounds = array<i64: 1, 1, 32>}, {transform_indices = @transform_8, window_bounds = array<i64: 1, 32, 64>}, {transform_indices = @transform_9, window_bounds = array<i64: 1, 1, 64>}, {transform_indices = @transform_10, window_bounds = array<i64: 1, 64, 32>}, {transform_indices = @transform_11, window_bounds = array<i64: 1, 1, 32>}, {transform_indices = @transform_12, window_bounds = array<i64: 1, 1, 32>}, {transform_indices = @transform_13, window_bounds = array<i64: 1, 1, 32>}, {transform_indices = @transform_14, window_bounds = array<i64: 2, 8, 32>}]} {
    %c0_i32 = arith.constant 0 : i32
    %0 = arith.cmpi eq, %arg1, %c0_i32 : i32
    %1 = arith.extui %0 : i1 to i32
    %c0_i32_0 = arith.constant 0 : i32
    %2 = arith.cmpi ne, %1, %c0_i32_0 : i32
    scf.if %2 {
      %c0_92 = arith.constant 0 : index
      %c0_93 = arith.constant 0 : index
      %c0_94 = arith.constant 0 : index
      %199 = vector.load %arg2[%c0_92, %c0_93, %c0_94] : memref<2x8x32xf32, #tpu.memory_space<vmem>>, vector<2x8x32xf32>
      %c0_95 = arith.constant 0 : index
      %c0_96 = arith.constant 0 : index
      %c0_97 = arith.constant 0 : index
      %200 = vector.load %arg16[%c0_95, %c0_96, %c0_97] : memref<2x8x32xf32, #tpu.memory_space<vmem>>, vector<2x8x32xf32>
      tpu.vector_store %arg16[%c0_95, %c0_96, %c0_97], %199 {strides = array<i32>} : memref<2x8x32xf32, #tpu.memory_space<vmem>>, vector<2x8x32xf32>,
    } else {
    }
    %c0 = arith.constant 0 : index
    %c0_1 = arith.constant 0 : index
    %c0_2 = arith.constant 0 : index
    %3 = vector.load %arg16[%c0, %c0_1, %c0_2] : memref<2x8x32xf32, #tpu.memory_space<vmem>>, vector<2x8x32xf32>
    %4 = vector.shape_cast %3 : vector<2x8x32xf32> to vector<16x32xf32>
    %5 = arith.truncf %4 : vector<16x32xf32> to vector<16x32xbf16>
    %c0_3 = arith.constant 0 : index
    %c0_4 = arith.constant 0 : index
    %c0_5 = arith.constant 0 : index
    %6 = vector.load %arg4[%c0_3, %c0_4, %c0_5] : memref<1x32x96xbf16, #tpu.memory_space<vmem>>, vector<1x32x96xbf16>
    %7 = vector.shape_cast %6 : vector<1x32x96xbf16> to vector<32x96xbf16>
    %cst = arith.constant dense<0.000000e+00> : vector<16x96xf32>
    %8 = tpu.matmul %5, %7, %cst {dimension_numbers = #tpu.dot_dimension_numbers<[1], [0], [0], [1], [0, 0, 1, 1], [], []>} : vector<16x32xbf16>, vector<32x96xbf16>, vector<16x96xf32> -> vector<16x96xf32>
    %c0_6 = arith.constant 0 : index
    %c0_7 = arith.constant 0 : index
    %c0_8 = arith.constant 0 : index
    %9 = vector.load %arg5[%c0_6, %c0_7, %c0_8] : memref<1x1x96xf32, #tpu.memory_space<vmem>>, vector<1x1x96xf32>
    %10 = vector.shape_cast %9 : vector<1x1x96xf32> to vector<1x96xf32>
    %11 = vector.broadcast %10 : vector<1x96xf32> to vector<16x96xf32>
    %12 = arith.addf %8, %11 : vector<16x96xf32>
    %13 = vector.extract_strided_slice %12 {offsets = [0, 0], sizes = [16, 32], strides = [1, 1]} : vector<16x96xf32> to vector<16x32xf32>
    %cst_9 = arith.constant 0.353553385 : f32
    %14 = vector.broadcast %cst_9 : f32 to vector<16x32xf32>
    %15 = arith.mulf %13, %14 : vector<16x32xf32>
    %16 = arith.truncf %15 : vector<16x32xf32> to vector<16x32xbf16>
    %17 = vector.shape_cast %16 : vector<16x32xbf16> to vector<2x8x32xbf16>
    %18 = vector.extract_strided_slice %12 {offsets = [0, 32], sizes = [16, 32], strides = [1, 1]} : vector<16x96xf32> to vector<16x32xf32>
    %19 = arith.truncf %18 : vector<16x32xf32> to vector<16x32xbf16>
    %20 = vector.shape_cast %19 : vector<16x32xbf16> to vector<2x8x32xbf16>
    %21 = vector.extract_strided_slice %12 {offsets = [0, 64], sizes = [16, 32], strides = [1, 1]} : vector<16x96xf32> to vector<16x32xf32>
    %22 = arith.truncf %21 : vector<16x32xf32> to vector<16x32xbf16>
    %23 = vector.shape_cast %22 : vector<16x32xbf16> to vector<2x8x32xbf16>
    %c0_10 = arith.constant 0 : index
    %c0_11 = arith.constant 0 : index
    %c0_12 = arith.constant 0 : index
    %24 = vector.load %arg3[%c0_10, %c0_11, %c0_12] : memref<2x1x8xf32, #tpu.memory_space<vmem>>, vector<2x1x8xf32>
    %25 = vector.shape_cast %24 : vector<2x1x8xf32> to vector<2x1x8xf32>
    %26 = vector.broadcast %25 : vector<2x1x8xf32> to vector<2x8x8xf32>
    %27 = vector.extract_strided_slice %17 {offsets = [0, 0, 0], sizes = [2, 8, 8], strides = [1, 1, 1]} : vector<2x8x32xbf16> to vector<2x8x8xbf16>
    %28 = vector.extract_strided_slice %20 {offsets = [0, 0, 0], sizes = [2, 8, 8], strides = [1, 1, 1]} : vector<2x8x32xbf16> to vector<2x8x8xbf16>
    "tpu.trace_start"() <{level = 10 : i32, message = "bqd,bkd->bqk"}> : () -> ()
    %cst_13 = arith.constant dense<0.000000e+00> : vector<2x8x8xf32>
    %29 = tpu.matmul %27, %28, %cst_13 {dimension_numbers = #tpu.dot_dimension_numbers<[2], [2], [1], [1], [0, 0, 0, 1, 1, 1], [0], [0]>} : vector<2x8x8xbf16>, vector<2x8x8xbf16>, vector<2x8x8xf32> -> vector<2x8x8xf32>
    "tpu.trace_stop"() : () -> ()
    %30 = arith.addf %29, %26 : vector<2x8x8xf32>
    %cst_14 = arith.constant dense<0xFF800000> : vector<2x8xf32>
    %31 = vector.multi_reduction <maximumf>, %30, %cst_14 [2] : vector<2x8x8xf32> to vector<2x8xf32>
    %32 = vector.shape_cast %31 : vector<2x8xf32> to vector<2x8x1xf32>
    %33 = vector.broadcast %32 : vector<2x8x1xf32> to vector<2x8x8xf32>
    %34 = arith.subf %30, %33 : vector<2x8x8xf32>
    %35 = math.exp %34 : vector<2x8x8xf32>
    %cst_15 = arith.constant dense<0.000000e+00> : vector<2x8xf32>
    %36 = vector.multi_reduction <add>, %35, %cst_15 [2] : vector<2x8x8xf32> to vector<2x8xf32>
    %37 = vector.shape_cast %36 : vector<2x8xf32> to vector<2x8x1xf32>
    %38 = tpu.reciprocal %37 {approx = true} : vector<2x8x1xf32> -> vector<2x8x1xf32>
    %39 = vector.broadcast %38 : vector<2x8x1xf32> to vector<2x8x8xf32>
    %40 = arith.mulf %35, %39 : vector<2x8x8xf32>
    %41 = arith.truncf %40 : vector<2x8x8xf32> to vector<2x8x8xbf16>
    %42 = vector.extract_strided_slice %23 {offsets = [0, 0, 0], sizes = [2, 8, 8], strides = [1, 1, 1]} : vector<2x8x32xbf16> to vector<2x8x8xbf16>
    "tpu.trace_start"() <{level = 10 : i32, message = "bqk,bkd->bqd"}> : () -> ()
    %cst_16 = arith.constant dense<0.000000e+00> : vector<2x8x8xf32>
    %43 = tpu.matmul %41, %42, %cst_16 {dimension_numbers = #tpu.dot_dimension_numbers<[2], [1], [1], [2], [0, 0, 0, 1, 1, 2], [0], [0]>} : vector<2x8x8xbf16>, vector<2x8x8xbf16>, vector<2x8x8xf32> -> vector<2x8x8xf32>
    "tpu.trace_stop"() : () -> ()
    %44 = arith.truncf %43 : vector<2x8x8xf32> to vector<2x8x8xbf16>
    %c0_17 = arith.constant 0 : index
    %c0_18 = arith.constant 0 : index
    %c0_19 = arith.constant 0 : index
    %45 = vector.load %arg17[%c0_17, %c0_18, %c0_19] : memref<2x8x32xbf16, #tpu.memory_space<vmem>>, vector<2x8x8xbf16>
    tpu.vector_store %arg17[%c0_17, %c0_18, %c0_19], %44 {strides = array<i32>} : memref<2x8x32xbf16, #tpu.memory_space<vmem>>, vector<2x8x8xbf16>,
    %46 = vector.extract_strided_slice %17 {offsets = [0, 0, 8], sizes = [2, 8, 8], strides = [1, 1, 1]} : vector<2x8x32xbf16> to vector<2x8x8xbf16>
    %47 = vector.extract_strided_slice %20 {offsets = [0, 0, 8], sizes = [2, 8, 8], strides = [1, 1, 1]} : vector<2x8x32xbf16> to vector<2x8x8xbf16>
    "tpu.trace_start"() <{level = 10 : i32, message = "bqd,bkd->bqk"}> : () -> ()
    %cst_20 = arith.constant dense<0.000000e+00> : vector<2x8x8xf32>
    %48 = tpu.matmul %46, %47, %cst_20 {dimension_numbers = #tpu.dot_dimension_numbers<[2], [2], [1], [1], [0, 0, 0, 1, 1, 1], [0], [0]>} : vector<2x8x8xbf16>, vector<2x8x8xbf16>, vector<2x8x8xf32> -> vector<2x8x8xf32>
    "tpu.trace_stop"() : () -> ()
    %49 = arith.addf %48, %26 : vector<2x8x8xf32>
    %cst_21 = arith.constant dense<0xFF800000> : vector<2x8xf32>
    %50 = vector.multi_reduction <maximumf>, %49, %cst_21 [2] : vector<2x8x8xf32> to vector<2x8xf32>
    %51 = vector.shape_cast %50 : vector<2x8xf32> to vector<2x8x1xf32>
    %52 = vector.broadcast %51 : vector<2x8x1xf32> to vector<2x8x8xf32>
    %53 = arith.subf %49, %52 : vector<2x8x8xf32>
    %54 = math.exp %53 : vector<2x8x8xf32>
    %cst_22 = arith.constant dense<0.000000e+00> : vector<2x8xf32>
    %55 = vector.multi_reduction <add>, %54, %cst_22 [2] : vector<2x8x8xf32> to vector<2x8xf32>
    %56 = vector.shape_cast %55 : vector<2x8xf32> to vector<2x8x1xf32>
    %57 = tpu.reciprocal %56 {approx = true} : vector<2x8x1xf32> -> vector<2x8x1xf32>
    %58 = vector.broadcast %57 : vector<2x8x1xf32> to vector<2x8x8xf32>
    %59 = arith.mulf %54, %58 : vector<2x8x8xf32>
    %60 = arith.truncf %59 : vector<2x8x8xf32> to vector<2x8x8xbf16>
    %61 = vector.extract_strided_slice %23 {offsets = [0, 0, 8], sizes = [2, 8, 8], strides = [1, 1, 1]} : vector<2x8x32xbf16> to vector<2x8x8xbf16>
    "tpu.trace_start"() <{level = 10 : i32, message = "bqk,bkd->bqd"}> : () -> ()
    %cst_23 = arith.constant dense<0.000000e+00> : vector<2x8x8xf32>
    %62 = tpu.matmul %60, %61, %cst_23 {dimension_numbers = #tpu.dot_dimension_numbers<[2], [1], [1], [2], [0, 0, 0, 1, 1, 2], [0], [0]>} : vector<2x8x8xbf16>, vector<2x8x8xbf16>, vector<2x8x8xf32> -> vector<2x8x8xf32>
    "tpu.trace_stop"() : () -> ()
    %63 = arith.truncf %62 : vector<2x8x8xf32> to vector<2x8x8xbf16>
    %c0_24 = arith.constant 0 : index
    %c0_25 = arith.constant 0 : index
    %c8 = arith.constant 8 : index
    %64 = vector.load %arg17[%c0_24, %c0_25, %c8] : memref<2x8x32xbf16, #tpu.memory_space<vmem>>, vector<2x8x8xbf16>
    tpu.vector_store %arg17[%c0_24, %c0_25, %c8], %63 {strides = array<i32>} : memref<2x8x32xbf16, #tpu.memory_space<vmem>>, vector<2x8x8xbf16>,
    %65 = vector.extract_strided_slice %17 {offsets = [0, 0, 16], sizes = [2, 8, 8], strides = [1, 1, 1]} : vector<2x8x32xbf16> to vector<2x8x8xbf16>
    %66 = vector.extract_strided_slice %20 {offsets = [0, 0, 16], sizes = [2, 8, 8], strides = [1, 1, 1]} : vector<2x8x32xbf16> to vector<2x8x8xbf16>
    "tpu.trace_start"() <{level = 10 : i32, message = "bqd,bkd->bqk"}> : () -> ()
    %cst_26 = arith.constant dense<0.000000e+00> : vector<2x8x8xf32>
    %67 = tpu.matmul %65, %66, %cst_26 {dimension_numbers = #tpu.dot_dimension_numbers<[2], [2], [1], [1], [0, 0, 0, 1, 1, 1], [0], [0]>} : vector<2x8x8xbf16>, vector<2x8x8xbf16>, vector<2x8x8xf32> -> vector<2x8x8xf32>
    "tpu.trace_stop"() : () -> ()
    %68 = arith.addf %67, %26 : vector<2x8x8xf32>
    %cst_27 = arith.constant dense<0xFF800000> : vector<2x8xf32>
    %69 = vector.multi_reduction <maximumf>, %68, %cst_27 [2] : vector<2x8x8xf32> to vector<2x8xf32>
    %70 = vector.shape_cast %69 : vector<2x8xf32> to vector<2x8x1xf32>
    %71 = vector.broadcast %70 : vector<2x8x1xf32> to vector<2x8x8xf32>
    %72 = arith.subf %68, %71 : vector<2x8x8xf32>
    %73 = math.exp %72 : vector<2x8x8xf32>
    %cst_28 = arith.constant dense<0.000000e+00> : vector<2x8xf32>
    %74 = vector.multi_reduction <add>, %73, %cst_28 [2] : vector<2x8x8xf32> to vector<2x8xf32>
    %75 = vector.shape_cast %74 : vector<2x8xf32> to vector<2x8x1xf32>
    %76 = tpu.reciprocal %75 {approx = true} : vector<2x8x1xf32> -> vector<2x8x1xf32>
    %77 = vector.broadcast %76 : vector<2x8x1xf32> to vector<2x8x8xf32>
    %78 = arith.mulf %73, %77 : vector<2x8x8xf32>
    %79 = arith.truncf %78 : vector<2x8x8xf32> to vector<2x8x8xbf16>
    %80 = vector.extract_strided_slice %23 {offsets = [0, 0, 16], sizes = [2, 8, 8], strides = [1, 1, 1]} : vector<2x8x32xbf16> to vector<2x8x8xbf16>
    "tpu.trace_start"() <{level = 10 : i32, message = "bqk,bkd->bqd"}> : () -> ()
    %cst_29 = arith.constant dense<0.000000e+00> : vector<2x8x8xf32>
    %81 = tpu.matmul %79, %80, %cst_29 {dimension_numbers = #tpu.dot_dimension_numbers<[2], [1], [1], [2], [0, 0, 0, 1, 1, 2], [0], [0]>} : vector<2x8x8xbf16>, vector<2x8x8xbf16>, vector<2x8x8xf32> -> vector<2x8x8xf32>
    "tpu.trace_stop"() : () -> ()
    %82 = arith.truncf %81 : vector<2x8x8xf32> to vector<2x8x8xbf16>
    %c0_30 = arith.constant 0 : index
    %c0_31 = arith.constant 0 : index
    %c16 = arith.constant 16 : index
    %83 = vector.load %arg17[%c0_30, %c0_31, %c16] : memref<2x8x32xbf16, #tpu.memory_space<vmem>>, vector<2x8x8xbf16>
    tpu.vector_store %arg17[%c0_30, %c0_31, %c16], %82 {strides = array<i32>} : memref<2x8x32xbf16, #tpu.memory_space<vmem>>, vector<2x8x8xbf16>,
    %84 = vector.extract_strided_slice %17 {offsets = [0, 0, 24], sizes = [2, 8, 8], strides = [1, 1, 1]} : vector<2x8x32xbf16> to vector<2x8x8xbf16>
    %85 = vector.extract_strided_slice %20 {offsets = [0, 0, 24], sizes = [2, 8, 8], strides = [1, 1, 1]} : vector<2x8x32xbf16> to vector<2x8x8xbf16>
    "tpu.trace_start"() <{level = 10 : i32, message = "bqd,bkd->bqk"}> : () -> ()
    %cst_32 = arith.constant dense<0.000000e+00> : vector<2x8x8xf32>
    %86 = tpu.matmul %84, %85, %cst_32 {dimension_numbers = #tpu.dot_dimension_numbers<[2], [2], [1], [1], [0, 0, 0, 1, 1, 1], [0], [0]>} : vector<2x8x8xbf16>, vector<2x8x8xbf16>, vector<2x8x8xf32> -> vector<2x8x8xf32>
    "tpu.trace_stop"() : () -> ()
    %87 = arith.addf %86, %26 : vector<2x8x8xf32>
    %cst_33 = arith.constant dense<0xFF800000> : vector<2x8xf32>
    %88 = vector.multi_reduction <maximumf>, %87, %cst_33 [2] : vector<2x8x8xf32> to vector<2x8xf32>
    %89 = vector.shape_cast %88 : vector<2x8xf32> to vector<2x8x1xf32>
    %90 = vector.broadcast %89 : vector<2x8x1xf32> to vector<2x8x8xf32>
    %91 = arith.subf %87, %90 : vector<2x8x8xf32>
    %92 = math.exp %91 : vector<2x8x8xf32>
    %cst_34 = arith.constant dense<0.000000e+00> : vector<2x8xf32>
    %93 = vector.multi_reduction <add>, %92, %cst_34 [2] : vector<2x8x8xf32> to vector<2x8xf32>
    %94 = vector.shape_cast %93 : vector<2x8xf32> to vector<2x8x1xf32>
    %95 = tpu.reciprocal %94 {approx = true} : vector<2x8x1xf32> -> vector<2x8x1xf32>
    %96 = vector.broadcast %95 : vector<2x8x1xf32> to vector<2x8x8xf32>
    %97 = arith.mulf %92, %96 : vector<2x8x8xf32>
    %98 = arith.truncf %97 : vector<2x8x8xf32> to vector<2x8x8xbf16>
    %99 = vector.extract_strided_slice %23 {offsets = [0, 0, 24], sizes = [2, 8, 8], strides = [1, 1, 1]} : vector<2x8x32xbf16> to vector<2x8x8xbf16>
    "tpu.trace_start"() <{level = 10 : i32, message = "bqk,bkd->bqd"}> : () -> ()
    %cst_35 = arith.constant dense<0.000000e+00> : vector<2x8x8xf32>
    %100 = tpu.matmul %98, %99, %cst_35 {dimension_numbers = #tpu.dot_dimension_numbers<[2], [1], [1], [2], [0, 0, 0, 1, 1, 2], [0], [0]>} : vector<2x8x8xbf16>, vector<2x8x8xbf16>, vector<2x8x8xf32> -> vector<2x8x8xf32>
    "tpu.trace_stop"() : () -> ()
    %101 = arith.truncf %100 : vector<2x8x8xf32> to vector<2x8x8xbf16>
    %c0_36 = arith.constant 0 : index
    %c0_37 = arith.constant 0 : index
    %c24 = arith.constant 24 : index
    %102 = vector.load %arg17[%c0_36, %c0_37, %c24] : memref<2x8x32xbf16, #tpu.memory_space<vmem>>, vector<2x8x8xbf16>
    tpu.vector_store %arg17[%c0_36, %c0_37, %c24], %101 {strides = array<i32>} : memref<2x8x32xbf16, #tpu.memory_space<vmem>>, vector<2x8x8xbf16>,
    %c0_38 = arith.constant 0 : index
    %c0_39 = arith.constant 0 : index
    %c0_40 = arith.constant 0 : index
    %103 = vector.load %arg17[%c0_38, %c0_39, %c0_40] : memref<2x8x32xbf16, #tpu.memory_space<vmem>>, vector<2x8x32xbf16>
    %104 = vector.shape_cast %103 : vector<2x8x32xbf16> to vector<16x32xbf16>
    %c0_41 = arith.constant 0 : index
    %c0_42 = arith.constant 0 : index
    %c0_43 = arith.constant 0 : index
    %105 = vector.load %arg6[%c0_41, %c0_42, %c0_43] : memref<1x32x32xbf16, #tpu.memory_space<vmem>>, vector<1x32x32xbf16>
    %106 = vector.shape_cast %105 : vector<1x32x32xbf16> to vector<32x32xbf16>
    %cst_44 = arith.constant dense<0.000000e+00> : vector<16x32xf32>
    %107 = tpu.matmul %104, %106, %cst_44 {dimension_numbers = #tpu.dot_dimension_numbers<[1], [0], [0], [1], [0, 0, 1, 1], [], []>} : vector<16x32xbf16>, vector<32x32xbf16>, vector<16x32xf32> -> vector<16x32xf32>
    %c0_45 = arith.constant 0 : index
    %c0_46 = arith.constant 0 : index
    %c0_47 = arith.constant 0 : index
    %108 = vector.load %arg7[%c0_45, %c0_46, %c0_47] : memref<1x1x32xf32, #tpu.memory_space<vmem>>, vector<1x1x32xf32>
    %109 = vector.shape_cast %108 : vector<1x1x32xf32> to vector<1x32xf32>
    %110 = vector.broadcast %109 : vector<1x32xf32> to vector<16x32xf32>
    %111 = arith.addf %107, %110 : vector<16x32xf32>
    %112 = arith.addf %111, %4 : vector<16x32xf32>
    %c0_48 = arith.constant 0 : index
    %c0_49 = arith.constant 0 : index
    %c0_50 = arith.constant 0 : index
    %113 = vector.load %arg8[%c0_48, %c0_49, %c0_50] : memref<1x1x32xf32, #tpu.memory_space<vmem>>, vector<1x1x32xf32>
    %114 = vector.shape_cast %113 : vector<1x1x32xf32> to vector<1x32xf32>
    %c0_51 = arith.constant 0 : index
    %c0_52 = arith.constant 0 : index
    %c0_53 = arith.constant 0 : index
    %115 = vector.load %arg9[%c0_51, %c0_52, %c0_53] : memref<1x1x32xf32, #tpu.memory_space<vmem>>, vector<1x1x32xf32>
    %116 = vector.shape_cast %115 : vector<1x1x32xf32> to vector<1x32xf32>
    %cst_54 = arith.constant dense<0.000000e+00> : vector<16xf32>
    %117 = vector.multi_reduction <add>, %112, %cst_54 [1] : vector<16x32xf32> to vector<16xf32>
    %118 = vector.shape_cast %117 : vector<16xf32> to vector<16x1xf32>
    %cst_55 = arith.constant 3.200000e+01 : f32
    %119 = vector.broadcast %cst_55 : f32 to vector<16x1xf32>
    %120 = arith.divf %118, %119 : vector<16x1xf32>
    %121 = vector.broadcast %120 : vector<16x1xf32> to vector<16x32xf32>
    %122 = arith.subf %112, %121 : vector<16x32xf32>
    %123 = arith.mulf %122, %122 : vector<16x32xf32>
    %cst_56 = arith.constant dense<0.000000e+00> : vector<16xf32>
    %124 = vector.multi_reduction <add>, %123, %cst_56 [1] : vector<16x32xf32> to vector<16xf32>
    %125 = vector.shape_cast %124 : vector<16xf32> to vector<16x1xf32>
    %cst_57 = arith.constant 3.200000e+01 : f32
    %126 = vector.broadcast %cst_57 : f32 to vector<16x1xf32>
    %127 = arith.divf %125, %126 : vector<16x1xf32>
    %128 = vector.broadcast %120 : vector<16x1xf32> to vector<16x32xf32>
    %129 = arith.subf %112, %128 : vector<16x32xf32>
    %cst_58 = arith.constant 9.99999996E-13 : f32
    %130 = vector.broadcast %cst_58 : f32 to vector<16x1xf32>
    %131 = arith.addf %127, %130 : vector<16x1xf32>
    %132 = math.rsqrt %131 : vector<16x1xf32>
    %133 = vector.broadcast %132 : vector<16x1xf32> to vector<16x32xf32>
    %134 = arith.mulf %129, %133 : vector<16x32xf32>
    %135 = vector.broadcast %114 : vector<1x32xf32> to vector<16x32xf32>
    %136 = arith.mulf %134, %135 : vector<16x32xf32>
    %137 = vector.broadcast %116 : vector<1x32xf32> to vector<16x32xf32>
    %138 = arith.addf %136, %137 : vector<16x32xf32>
    %139 = arith.truncf %138 : vector<16x32xf32> to vector<16x32xbf16>
    %cst_59 = arith.constant 0.000000e+00 : f32
    %140 = vector.broadcast %cst_59 : f32 to vector<16x32xf32>
    %c0_60 = arith.constant 0 : index
    %c0_61 = arith.constant 0 : index
    %c0_62 = arith.constant 0 : index
    %141 = vector.load %arg10[%c0_60, %c0_61, %c0_62] : memref<1x32x64xbf16, #tpu.memory_space<vmem>>, vector<1x32x64xbf16>
    %142 = vector.shape_cast %141 : vector<1x32x64xbf16> to vector<32x64xbf16>
    %cst_63 = arith.constant dense<0.000000e+00> : vector<16x64xf32>
    %143 = tpu.matmul %139, %142, %cst_63 {dimension_numbers = #tpu.dot_dimension_numbers<[1], [0], [0], [1], [0, 0, 1, 1], [], []>} : vector<16x32xbf16>, vector<32x64xbf16>, vector<16x64xf32> -> vector<16x64xf32>
    %c0_64 = arith.constant 0 : index
    %c0_65 = arith.constant 0 : index
    %c0_66 = arith.constant 0 : index
    %144 = vector.load %arg11[%c0_64, %c0_65, %c0_66] : memref<1x1x64xf32, #tpu.memory_space<vmem>>, vector<1x1x64xf32>
    %145 = vector.shape_cast %144 : vector<1x1x64xf32> to vector<1x64xf32>
    %146 = vector.broadcast %145 : vector<1x64xf32> to vector<16x64xf32>
    %147 = arith.addf %143, %146 : vector<16x64xf32>
    %cst_67 = arith.constant 5.000000e-01 : f32
    %148 = vector.broadcast %cst_67 : f32 to vector<16x64xf32>
    %149 = arith.mulf %148, %147 : vector<16x64xf32>
    %cst_68 = arith.constant 4.471500e-02 : f32
    %150 = vector.broadcast %cst_68 : f32 to vector<16x64xf32>
    %151 = arith.mulf %150, %147 : vector<16x64xf32>
    %152 = arith.mulf %151, %147 : vector<16x64xf32>
    %153 = arith.mulf %152, %147 : vector<16x64xf32>
    %154 = arith.addf %147, %153 : vector<16x64xf32>
    %cst_69 = arith.constant 0.797884583 : f32
    %155 = vector.broadcast %cst_69 : f32 to vector<16x64xf32>
    %156 = arith.mulf %155, %154 : vector<16x64xf32>
    %157 = math.tanh %156 : vector<16x64xf32>
    %cst_70 = arith.constant 1.000000e+00 : f32
    %158 = vector.broadcast %cst_70 : f32 to vector<16x64xf32>
    %159 = arith.addf %158, %157 : vector<16x64xf32>
    %160 = arith.mulf %149, %159 : vector<16x64xf32>
    %161 = arith.truncf %160 : vector<16x64xf32> to vector<16x64xbf16>
    %c0_71 = arith.constant 0 : index
    %c0_72 = arith.constant 0 : index
    %c0_73 = arith.constant 0 : index
    %162 = vector.load %arg12[%c0_71, %c0_72, %c0_73] : memref<1x64x32xbf16, #tpu.memory_space<vmem>>, vector<1x64x32xbf16>
    %163 = vector.shape_cast %162 : vector<1x64x32xbf16> to vector<64x32xbf16>
    %cst_74 = arith.constant dense<0.000000e+00> : vector<16x32xf32>
    %164 = tpu.matmul %161, %163, %cst_74 {dimension_numbers = #tpu.dot_dimension_numbers<[1], [0], [0], [1], [0, 0, 1, 1], [], []>} : vector<16x64xbf16>, vector<64x32xbf16>, vector<16x32xf32> -> vector<16x32xf32>
    %165 = arith.addf %140, %164 : vector<16x32xf32>
    %c0_75 = arith.constant 0 : index
    %c0_76 = arith.constant 0 : index
    %c0_77 = arith.constant 0 : index
    %166 = vector.load %arg13[%c0_75, %c0_76, %c0_77] : memref<1x1x32xf32, #tpu.memory_space<vmem>>, vector<1x1x32xf32>
    %167 = vector.shape_cast %166 : vector<1x1x32xf32> to vector<1x32xf32>
    %168 = vector.broadcast %167 : vector<1x32xf32> to vector<16x32xf32>
    %169 = arith.addf %165, %168 : vector<16x32xf32>
    %170 = arith.addf %169, %138 : vector<16x32xf32>
    %c0_78 = arith.constant 0 : index
    %c0_79 = arith.constant 0 : index
    %c0_80 = arith.constant 0 : index
    %171 = vector.load %arg14[%c0_78, %c0_79, %c0_80] : memref<1x1x32xf32, #tpu.memory_space<vmem>>, vector<1x1x32xf32>
    %172 = vector.shape_cast %171 : vector<1x1x32xf32> to vector<1x32xf32>
    %c0_81 = arith.constant 0 : index
    %c0_82 = arith.constant 0 : index
    %c0_83 = arith.constant 0 : index
    %173 = vector.load %arg15[%c0_81, %c0_82, %c0_83] : memref<1x1x32xf32, #tpu.memory_space<vmem>>, vector<1x1x32xf32>
    %174 = vector.shape_cast %173 : vector<1x1x32xf32> to vector<1x32xf32>
    %cst_84 = arith.constant dense<0.000000e+00> : vector<16xf32>
    %175 = vector.multi_reduction <add>, %170, %cst_84 [1] : vector<16x32xf32> to vector<16xf32>
    %176 = vector.shape_cast %175 : vector<16xf32> to vector<16x1xf32>
    %cst_85 = arith.constant 3.200000e+01 : f32
    %177 = vector.broadcast %cst_85 : f32 to vector<16x1xf32>
    %178 = arith.divf %176, %177 : vector<16x1xf32>
    %179 = vector.broadcast %178 : vector<16x1xf32> to vector<16x32xf32>
    %180 = arith.subf %170, %179 : vector<16x32xf32>
    %181 = arith.mulf %180, %180 : vector<16x32xf32>
    %cst_86 = arith.constant dense<0.000000e+00> : vector<16xf32>
    %182 = vector.multi_reduction <add>, %181, %cst_86 [1] : vector<16x32xf32> to vector<16xf32>
    %183 = vector.shape_cast %182 : vector<16xf32> to vector<16x1xf32>
    %cst_87 = arith.constant 3.200000e+01 : f32
    %184 = vector.broadcast %cst_87 : f32 to vector<16x1xf32>
    %185 = arith.divf %183, %184 : vector<16x1xf32>
    %186 = vector.broadcast %178 : vector<16x1xf32> to vector<16x32xf32>
    %187 = arith.subf %170, %186 : vector<16x32xf32>
    %cst_88 = arith.constant 9.99999996E-13 : f32
    %188 = vector.broadcast %cst_88 : f32 to vector<16x1xf32>
    %189 = arith.addf %185, %188 : vector<16x1xf32>
    %190 = math.rsqrt %189 : vector<16x1xf32>
    %191 = vector.broadcast %190 : vector<16x1xf32> to vector<16x32xf32>
    %192 = arith.mulf %187, %191 : vector<16x32xf32>
    %193 = vector.broadcast %172 : vector<1x32xf32> to vector<16x32xf32>
    %194 = arith.mulf %192, %193 : vector<16x32xf32>
    %195 = vector.broadcast %174 : vector<1x32xf32> to vector<16x32xf32>
    %196 = arith.addf %194, %195 : vector<16x32xf32>
    %197 = vector.shape_cast %196 : vector<16x32xf32> to vector<2x8x32xf32>
    %c0_89 = arith.constant 0 : index
    %c0_90 = arith.constant 0 : index
    %c0_91 = arith.constant 0 : index
    %198 = vector.load %arg16[%c0_89, %c0_90, %c0_91] : memref<2x8x32xf32, #tpu.memory_space<vmem>>, vector<2x8x32xf32>
    tpu.vector_store %arg16[%c0_89, %c0_90, %c0_91], %197 {strides = array<i32>} : memref<2x8x32xf32, #tpu.memory_space<vmem>>, vector<2x8x32xf32>,
    return
  }
  func.func @transform_0(%arg0: i32, %arg1: i32) -> (i32, i32, i32) {
    %c0_i32 = arith.constant 0 : i32
    %c0_i32_0 = arith.constant 0 : i32
    %c0_i32_1 = arith.constant 0 : i32
    return %arg0, %c0_i32, %c0_i32_0 : i32, i32, i32
  }
  func.func @transform_1(%arg0: i32, %arg1: i32) -> (i32, i32, i32) {
    %c0_i32 = arith.constant 0 : i32
    %c0_i32_0 = arith.constant 0 : i32
    %c0_i32_1 = arith.constant 0 : i32
    return %arg0, %c0_i32, %c0_i32_0 : i32, i32, i32
  }
  func.func @transform_2(%arg0: i32, %arg1: i32) -> (i32, i32, i32) {
    %c0_i32 = arith.constant 0 : i32
    %c0_i32_0 = arith.constant 0 : i32
    %c0_i32_1 = arith.constant 0 : i32
    return %arg1, %c0_i32, %c0_i32_0 : i32, i32, i32
  }
  func.func @transform_3(%arg0: i32, %arg1: i32) -> (i32, i32, i32) {
    %c0_i32 = arith.constant 0 : i32
    %c0_i32_0 = arith.constant 0 : i32
    %c0_i32_1 = arith.constant 0 : i32
    return %arg1, %c0_i32, %c0_i32_0 : i32, i32, i32
  }
  func.func @transform_4(%arg0: i32, %arg1: i32) -> (i32, i32, i32) {
    %c0_i32 = arith.constant 0 : i32
    %c0_i32_0 = arith.constant 0 : i32
    %c0_i32_1 = arith.constant 0 : i32
    return %arg1, %c0_i32, %c0_i32_0 : i32, i32, i32
  }
  func.func @transform_5(%arg0: i32, %arg1: i32) -> (i32, i32, i32) {
    %c0_i32 = arith.constant 0 : i32
    %c0_i32_0 = arith.constant 0 : i32
    %c0_i32_1 = arith.constant 0 : i32
    return %arg1, %c0_i32, %c0_i32_0 : i32, i32, i32
  }
  func.func @transform_6(%arg0: i32, %arg1: i32) -> (i32, i32, i32) {
    %c0_i32 = arith.constant 0 : i32
    %c0_i32_0 = arith.constant 0 : i32
    %c0_i32_1 = arith.constant 0 : i32
    return %arg1, %c0_i32, %c0_i32_0 : i32, i32, i32
  }
  func.func @transform_7(%arg0: i32, %arg1: i32) -> (i32, i32, i32) {
    %c0_i32 = arith.constant 0 : i32
    %c0_i32_0 = arith.constant 0 : i32
    %c0_i32_1 = arith.constant 0 : i32
    return %arg1, %c0_i32, %c0_i32_0 : i32, i32, i32
  }
  func.func @transform_8(%arg0: i32, %arg1: i32) -> (i32, i32, i32) {
    %c0_i32 = arith.constant 0 : i32
    %c0_i32_0 = arith.constant 0 : i32
    %c0_i32_1 = arith.constant 0 : i32
    return %arg1, %c0_i32, %c0_i32_0 : i32, i32, i32
  }
  func.func @transform_9(%arg0: i32, %arg1: i32) -> (i32, i32, i32) {
    %c0_i32 = arith.constant 0 : i32
    %c0_i32_0 = arith.constant 0 : i32
    %c0_i32_1 = arith.constant 0 : i32
    return %arg1, %c0_i32, %c0_i32_0 : i32, i32, i32
  }
  func.func @transform_10(%arg0: i32, %arg1: i32) -> (i32, i32, i32) {
    %c0_i32 = arith.constant 0 : i32
    %c0_i32_0 = arith.constant 0 : i32
    %c0_i32_1 = arith.constant 0 : i32
    return %arg1, %c0_i32, %c0_i32_0 : i32, i32, i32
  }
  func.func @transform_11(%arg0: i32, %arg1: i32) -> (i32, i32, i32) {
    %c0_i32 = arith.constant 0 : i32
    %c0_i32_0 = arith.constant 0 : i32
    %c0_i32_1 = arith.constant 0 : i32
    return %arg1, %c0_i32, %c0_i32_0 : i32, i32, i32
  }
  func.func @transform_12(%arg0: i32, %arg1: i32) -> (i32, i32, i32) {
    %c0_i32 = arith.constant 0 : i32
    %c0_i32_0 = arith.constant 0 : i32
    %c0_i32_1 = arith.constant 0 : i32
    return %arg1, %c0_i32, %c0_i32_0 : i32, i32, i32
  }
  func.func @transform_13(%arg0: i32, %arg1: i32) -> (i32, i32, i32) {
    %c0_i32 = arith.constant 0 : i32
    %c0_i32_0 = arith.constant 0 : i32
    %c0_i32_1 = arith.constant 0 : i32
    return %arg1, %c0_i32, %c0_i32_0 : i32, i32, i32
  }
  func.func @transform_14(%arg0: i32, %arg1: i32) -> (i32, i32, i32) {
    %c0_i32 = arith.constant 0 : i32
    %c0_i32_0 = arith.constant 0 : i32
    %c0_i32_1 = arith.constant 0 : i32
    return %arg0, %c0_i32, %c0_i32_0 : i32, i32, i32
  }
}

</mosaic_0001>

<llo_original>
// kernel: tpu_custom_call.1
$region0: #{tpu_custom_call.1}
  #allocation0 [shape = 'u32[]', space=smem, size = 0x4, offset = 0x4, fixed_abs, tag = 'smem constant byte address 0x4 - core index']
  #allocation1 [shape = 'u32[144,128]{1,0:T(1,128)}', space=vmem, size = 0x12000, scoped, tag = 'internal scratch']
  #allocation2 [shape = 'bf16[2,8,32]{2,1,0:T(8,128)(2,1)}', space=vmem, size = 0x1000, scoped, tag = 'scratch operand']
  %s0 = inlined_call_operand.hbm [shape: f32[2,8,32], index: 0, kind: input, shape index: {}]
  %s1 = inlined_call_operand.hbm [shape: f32[2,1,8], index: 1, kind: input, shape index: {}]
  %s2 = inlined_call_operand.vmem [shape: bf16[2,32,96], index: 2, kind: input, shape index: {}]
  %s3 = inlined_call_operand.vmem [shape: f32[2,1,96], index: 3, kind: input, shape index: {}]
  %s4 = inlined_call_operand.vmem [shape: bf16[2,32,32], index: 4, kind: input, shape index: {}]
  %s5 = inlined_call_operand.vmem [shape: f32[2,1,32], index: 5, kind: input, shape index: {}]
  %s6 = inlined_call_operand.vmem [shape: f32[2,1,32], index: 6, kind: input, shape index: {}]
  %s7 = inlined_call_operand.vmem [shape: f32[2,1,32], index: 7, kind: input, shape index: {}]
  %s8 = inlined_call_operand.vmem [shape: bf16[2,32,64], index: 8, kind: input, shape index: {}]
  %s9 = inlined_call_operand.vmem [shape: f32[2,1,64], index: 9, kind: input, shape index: {}]
  %s10 = inlined_call_operand.vmem [shape: bf16[2,64,32], index: 10, kind: input, shape index: {}]
  %s11 = inlined_call_operand.vmem [shape: f32[2,1,32], index: 11, kind: input, shape index: {}]
  %s12 = inlined_call_operand.vmem [shape: f32[2,1,32], index: 12, kind: input, shape index: {}]
  %s13 = inlined_call_operand.vmem [shape: f32[2,1,32], index: 13, kind: input, shape index: {}]
  %s14 = inlined_call_operand.hbm [shape: f32[2,8,32], index: 14, kind: output, shape index: {}]
  %s15 = sld [smem:[#allocation0]]
  $region101: #{tpu_custom_call.1} parent=0
    _
  %s17 = ssub.s32 1, %s15
  %s18 = scalar_select 0, %s17, %s15
  $region1: #{tpu_custom_call.1} parent=0
    #allocation3 [shape = 'u8[8192]{0}', space=vmem, size = 0x2000, scoped, tag = 'input window, operand 0, single buffered']
    #allocation4 [shape = 's32[2]{0}', space=sflag, size = 0x8, scoped, tag = 'scoped memory for tpu_custom_call.1']
    #allocation5 [shape = 's32[2]{0}', space=sflag, size = 0x8, scoped, tag = 'scoped memory for tpu_custom_call.1']
    #allocation6 [shape = 'u8[1024]{0}', space=vmem, size = 0x400, scoped, tag = 'input window, operand 1, single buffered']
    #allocation7 [shape = 's32[1]{0}', space=sflag, size = 0x4, scoped, tag = 'scoped memory for tpu_custom_call.1']
    #allocation8 [shape = 'u8[8192]{0}', space=vmem, size = 0x2000, scoped, tag = 'output window, operand 0, single buffered']
    %19 = vsyncpa [#allocation4], 0
    %20 = vsyncpa [#allocation7], 0
    %21 = vsyncpa [#allocation5], 0
    loop: start=0, step=1, limit=4
    $region2: #{tpu_custom_call.1} parent=1 // loop_pre_header
      _
    $region3: #{tpu_custom_call.1} parent=1 // loop_header
      %s23 = sphi 0, %s27
      %p24 = scmp.ge.s32.totalorder %s23, 4
      %s30 = sphi 0, %s42
      %s31 = sphi 0, %s38
      %s32 = sphi 0, %s30
      %s33 = sphi 0, %s31
      %s34 = sphi 0, %s32
      %s35 = sphi 0, %s33
      %s45 = sphi 0, %s47
      %s48 = sphi 0, %s45
      %s49 = sphi 0, %s48
      %s65 = sphi 0, %s49
      %s71 = sphi 0, %s73
      %s74 = sphi 0, %s71
      %s75 = sphi 0, %s74
      %s91 = sphi 0, %s75
      %s97 = sphi 0, %s99
      %s100 = sphi 0, %s97
      %s101 = sphi 0, %s100
      %s117 = sphi 0, %s101
      %s123 = sphi 0, %s125
      %s126 = sphi 0, %s123
      %s127 = sphi 0, %s126
      %s143 = sphi 0, %s127
      %s149 = sphi 0, %s151
      %s152 = sphi 0, %s149
      %s153 = sphi 0, %s152
      %s169 = sphi 0, %s153
      %s175 = sphi 0, %s177
      %s178 = sphi 0, %s175
      %s179 = sphi 0, %s178
      %s195 = sphi 0, %s179
      %s201 = sphi 0, %s203
      %s204 = sphi 0, %s201
      %s205 = sphi 0, %s204
      %s221 = sphi 0, %s205
      %s227 = sphi 0, %s229
      %s230 = sphi 0, %s227
      %s231 = sphi 0, %s230
      %s247 = sphi 0, %s231
      %s253 = sphi 0, %s255
      %s256 = sphi 0, %s253
      %s257 = sphi 0, %s256
      %s273 = sphi 0, %s257
      %s279 = sphi 0, %s281
      %s282 = sphi 0, %s279
      %s283 = sphi 0, %s282
      %s299 = sphi 0, %s283
      %s305 = sphi 0, %s307
      %s308 = sphi 0, %s305
      %s309 = sphi 0, %s308
      %s325 = sphi 0, %s309
      %s331 = sphi 0, %s333
      %s334 = sphi 0, %s331
      %s335 = sphi 0, %s334
      %s351 = sphi 0, %s335
      %s357 = sphi 0, %s359
      %s360 = sphi 0, %s357
      %s361 = sphi 0, %s360
      %s377 = sphi 0, %s361
      %s383 = sphi 0, %s385
      %s386 = sphi 0, %s383
      %s387 = sphi 0, %s386
      %s403 = sphi 0, %s387
      %s409 = sphi 0, %s411
      %s412 = sphi 0, %s409
      %s413 = sphi 0, %s412
      %s429 = sphi 0, %s413
    $region4: #{tpu_custom_call.1} parent=1 // loop_header_branch
      %26 = sbr.rel (%p24) target = $region8
    $region5: #{tpu_custom_call.1} parent=1 // loop_body
      %s28 = ssub.s32 %s23, 1
      %s29 = ssub.s32 %s23, 2
      %s36 = sadd.s32 1, %s31
      %p37 = scmp.ge.s32.totalorder %s36, 2
      %s38 = scalar_select %p37, 0, %s36
      %s39 = sadd.s32 1, %s30
      %s40 = scalar_select %p37, %s39, %s30
      %p41 = scmp.ge.s32.totalorder %s40, 1
      %s42 = scalar_select %p41, 0, %s40
      %s43 = ssub.s32 %s30, %s42
      %p44 = scmp.eq.s32.totalorder %s43, 0
      %s46 = sadd.s32 %s45, 1
      %s47 = scalar_select %p44, %s45, %s46
      %p50 = pneg %p44
      %p51 = scmp.eq.s32.totalorder %s23, 1
      %p52 = por %p50, %p51
      %p53 = scmp.ne.s32.totalorder %s45, %s48
      %p54 = scmp.eq.s32.totalorder %s23, 0
      %p55 = por %p53, %p54
      %p56 = scmp.ne.s32.totalorder %s45, %s48
      %p57 = scmp.eq.s32.totalorder %s28, 1
      %p58 = por %p56, %p57
      %p59 = scmp.ne.s32.totalorder %s48, %s49
      %p60 = scmp.eq.s32.totalorder %s28, 0
      %p61 = por %p59, %p60
      %p62 = scmp.ne.s32.totalorder %s48, %s49
      %p63 = scmp.eq.s32.totalorder %s29, 1
      %p64 = por %p62, %p63
      %p66 = scmp.ne.s32.totalorder %s49, %s65
      %p67 = scmp.eq.s32.totalorder %s29, 0
      %p68 = por %p66, %p67
      %s69 = ssub.s32 %s30, %s42
      %p70 = scmp.eq.s32.totalorder %s69, 0
      %s72 = sadd.s32 %s71, 1
      %s73 = scalar_select %p70, %s71, %s72
      %p76 = pneg %p70
      %p77 = scmp.eq.s32.totalorder %s23, 1
      %p78 = por %p76, %p77
      %p79 = scmp.ne.s32.totalorder %s71, %s74
      %p80 = scmp.eq.s32.totalorder %s23, 0
      %p81 = por %p79, %p80
      %p82 = scmp.ne.s32.totalorder %s71, %s74
      %p83 = scmp.eq.s32.totalorder %s28, 1
      %p84 = por %p82, %p83
      %p85 = scmp.ne.s32.totalorder %s74, %s75
      %p86 = scmp.eq.s32.totalorder %s28, 0
      %p87 = por %p85, %p86
      %p88 = scmp.ne.s32.totalorder %s74, %s75
      %p89 = scmp.eq.s32.totalorder %s29, 1
      %p90 = por %p88, %p89
      %p92 = scmp.ne.s32.totalorder %s75, %s91
      %p93 = scmp.eq.s32.totalorder %s29, 0
      %p94 = por %p92, %p93
      %s95 = ssub.s32 %s31, %s38
      %p96 = scmp.eq.s32.totalorder %s95, 0
      %s98 = sadd.s32 %s97, 1
      %s99 = scalar_select %p96, %s97, %s98
      %p102 = pneg %p96
      %p103 = scmp.eq.s32.totalorder %s23, 1
      %p104 = por %p102, %p103
      %p105 = scmp.ne.s32.totalorder %s97, %s100
      %p106 = scmp.eq.s32.totalorder %s23, 0
      %p107 = por %p105, %p106
      %p108 = scmp.ne.s32.totalorder %s97, %s100
      %p109 = scmp.eq.s32.totalorder %s28, 1
      %p110 = por %p108, %p109
      %p111 = scmp.ne.s32.totalorder %s100, %s101
      %p112 = scmp.eq.s32.totalorder %s28, 0
      %p113 = por %p111, %p112
      %p114 = scmp.ne.s32.totalorder %s100, %s101
      %p115 = scmp.eq.s32.totalorder %s29, 1
      %p116 = por %p114, %p115
      %p118 = scmp.ne.s32.totalorder %s101, %s117
      %p119 = scmp.eq.s32.totalorder %s29, 0
      %p120 = por %p118, %p119
      %s121 = ssub.s32 %s31, %s38
      %p122 = scmp.eq.s32.totalorder %s121, 0
      %s124 = sadd.s32 %s123, 1
      %s125 = scalar_select %p122, %s123, %s124
      %p128 = pneg %p122
      %p129 = scmp.eq.s32.totalorder %s23, 1
      %p130 = por %p128, %p129
      %p131 = scmp.ne.s32.totalorder %s123, %s126
      %p132 = scmp.eq.s32.totalorder %s23, 0
      %p133 = por %p131, %p132
      %p134 = scmp.ne.s32.totalorder %s123, %s126
      %p135 = scmp.eq.s32.totalorder %s28, 1
      %p136 = por %p134, %p135
      %p137 = scmp.ne.s32.totalorder %s126, %s127
      %p138 = scmp.eq.s32.totalorder %s28, 0
      %p139 = por %p137, %p138
      %p140 = scmp.ne.s32.totalorder %s126, %s127
      %p141 = scmp.eq.s32.totalorder %s29, 1
      %p142 = por %p140, %p141
      %p144 = scmp.ne.s32.totalorder %s127, %s143
      %p145 = scmp.eq.s32.totalorder %s29, 0
      %p146 = por %p144, %p145
      %s147 = ssub.s32 %s31, %s38
      %p148 = scmp.eq.s32.totalorder %s147, 0
      %s150 = sadd.s32 %s149, 1
      %s151 = scalar_select %p148, %s149, %s150
      %p154 = pneg %p148
      %p155 = scmp.eq.s32.totalorder %s23, 1
      %p156 = por %p154, %p155
      %p157 = scmp.ne.s32.totalorder %s149, %s152
      %p158 = scmp.eq.s32.totalorder %s23, 0
      %p159 = por %p157, %p158
      %p160 = scmp.ne.s32.totalorder %s149, %s152
      %p161 = scmp.eq.s32.totalorder %s28, 1
      %p162 = por %p160, %p161
      %p163 = scmp.ne.s32.totalorder %s152, %s153
      %p164 = scmp.eq.s32.totalorder %s28, 0
      %p165 = por %p163, %p164
      %p166 = scmp.ne.s32.totalorder %s152, %s153
      %p167 = scmp.eq.s32.totalorder %s29, 1
      %p168 = por %p166, %p167
      %p170 = scmp.ne.s32.totalorder %s153, %s169
      %p171 = scmp.eq.s32.totalorder %s29, 0
      %p172 = por %p170, %p171
      %s173 = ssub.s32 %s31, %s38
      %p174 = scmp.eq.s32.totalorder %s173, 0
      %s176 = sadd.s32 %s175, 1
      %s177 = scalar_select %p174, %s175, %s176
      %p180 = pneg %p174
      %p181 = scmp.eq.s32.totalorder %s23, 1
      %p182 = por %p180, %p181
      %p183 = scmp.ne.s32.totalorder %s175, %s178
      %p184 = scmp.eq.s32.totalorder %s23, 0
      %p185 = por %p183, %p184
      %p186 = scmp.ne.s32.totalorder %s175, %s178
      %p187 = scmp.eq.s32.totalorder %s28, 1
      %p188 = por %p186, %p187
      %p189 = scmp.ne.s32.totalorder %s178, %s179
      %p190 = scmp.eq.s32.totalorder %s28, 0
      %p191 = por %p189, %p190
      %p192 = scmp.ne.s32.totalorder %s178, %s179
      %p193 = scmp.eq.s32.totalorder %s29, 1
      %p194 = por %p192, %p193
      %p196 = scmp.ne.s32.totalorder %s179, %s195
      %p197 = scmp.eq.s32.totalorder %s29, 0
      %p198 = por %p196, %p197
      %s199 = ssub.s32 %s31, %s38
      %p200 = scmp.eq.s32.totalorder %s199, 0
      %s202 = sadd.s32 %s201, 1
      %s203 = scalar_select %p200, %s201, %s202
      %p206 = pneg %p200
      %p207 = scmp.eq.s32.totalorder %s23, 1
      %p208 = por %p206, %p207
      %p209 = scmp.ne.s32.totalorder %s201, %s204
      %p210 = scmp.eq.s32.totalorder %s23, 0
      %p211 = por %p209, %p210
      %p212 = scmp.ne.s32.totalorder %s201, %s204
      %p213 = scmp.eq.s32.totalorder %s28, 1
      %p214 = por %p212, %p213
      %p215 = scmp.ne.s32.totalorder %s204, %s205
      %p216 = scmp.eq.s32.totalorder %s28, 0
      %p217 = por %p215, %p216
      %p218 = scmp.ne.s32.totalorder %s204, %s205
      %p219 = scmp.eq.s32.totalorder %s29, 1
      %p220 = por %p218, %p219
      %p222 = scmp.ne.s32.totalorder %s205, %s221
      %p223 = scmp.eq.s32.totalorder %s29, 0
      %p224 = por %p222, %p223
      %s225 = ssub.s32 %s31, %s38
      %p226 = scmp.eq.s32.totalorder %s225, 0
      %s228 = sadd.s32 %s227, 1
      %s229 = scalar_select %p226, %s227, %s228
      %p232 = pneg %p226
      %p233 = scmp.eq.s32.totalorder %s23, 1
      %p234 = por %p232, %p233
      %p235 = scmp.ne.s32.totalorder %s227, %s230
      %p236 = scmp.eq.s32.totalorder %s23, 0
      %p237 = por %p235, %p236
      %p238 = scmp.ne.s32.totalorder %s227, %s230
      %p239 = scmp.eq.s32.totalorder %s28, 1
      %p240 = por %p238, %p239
      %p241 = scmp.ne.s32.totalorder %s230, %s231
      %p242 = scmp.eq.s32.totalorder %s28, 0
      %p243 = por %p241, %p242
      %p244 = scmp.ne.s32.totalorder %s230, %s231
      %p245 = scmp.eq.s32.totalorder %s29, 1
      %p246 = por %p244, %p245
      %p248 = scmp.ne.s32.totalorder %s231, %s247
      %p249 = scmp.eq.s32.totalorder %s29, 0
      %p250 = por %p248, %p249
      %s251 = ssub.s32 %s31, %s38
      %p252 = scmp.eq.s32.totalorder %s251, 0
      %s254 = sadd.s32 %s253, 1
      %s255 = scalar_select %p252, %s253, %s254
      %p258 = pneg %p252
      %p259 = scmp.eq.s32.totalorder %s23, 1
      %p260 = por %p258, %p259
      %p261 = scmp.ne.s32.totalorder %s253, %s256
      %p262 = scmp.eq.s32.totalorder %s23, 0
      %p263 = por %p261, %p262
      %p264 = scmp.ne.s32.totalorder %s253, %s256
      %p265 = scmp.eq.s32.totalorder %s28, 1
      %p266 = por %p264, %p265
      %p267 = scmp.ne.s32.totalorder %s256, %s257
      %p268 = scmp.eq.s32.totalorder %s28, 0
      %p269 = por %p267, %p268
      %p270 = scmp.ne.s32.totalorder %s256, %s257
      %p271 = scmp.eq.s32.totalorder %s29, 1
      %p272 = por %p270, %p271
      %p274 = scmp.ne.s32.totalorder %s257, %s273
      %p275 = scmp.eq.s32.totalorder %s29, 0
      %p276 = por %p274, %p275
      %s277 = ssub.s32 %s31, %s38
      %p278 = scmp.eq.s32.totalorder %s277, 0
      %s280 = sadd.s32 %s279, 1
      %s281 = scalar_select %p278, %s279, %s280
      %p284 = pneg %p278
      %p285 = scmp.eq.s32.totalorder %s23, 1
      %p286 = por %p284, %p285
      %p287 = scmp.ne.s32.totalorder %s279, %s282
      %p288 = scmp.eq.s32.totalorder %s23, 0
      %p289 = por %p287, %p288
      %p290 = scmp.ne.s32.totalorder %s279, %s282
      %p291 = scmp.eq.s32.totalorder %s28, 1
      %p292 = por %p290, %p291
      %p293 = scmp.ne.s32.totalorder %s282, %s283
      %p294 = scmp.eq.s32.totalorder %s28, 0
      %p295 = por %p293, %p294
      %p296 = scmp.ne.s32.totalorder %s282, %s283
      %p297 = scmp.eq.s32.totalorder %s29, 1
      %p298 = por %p296, %p297
      %p300 = scmp.ne.s32.totalorder %s283, %s299
      %p301 = scmp.eq.s32.totalorder %s29, 0
      %p302 = por %p300, %p301
      %s303 = ssub.s32 %s31, %s38
      %p304 = scmp.eq.s32.totalorder %s303, 0
      %s306 = sadd.s32 %s305, 1
      %s307 = scalar_select %p304, %s305, %s306
      %p310 = pneg %p304
      %p311 = scmp.eq.s32.totalorder %s23, 1
      %p312 = por %p310, %p311
      %p313 = scmp.ne.s32.totalorder %s305, %s308
      %p314 = scmp.eq.s32.totalorder %s23, 0
      %p315 = por %p313, %p314
      %p316 = scmp.ne.s32.totalorder %s305, %s308
      %p317 = scmp.eq.s32.totalorder %s28, 1
      %p318 = por %p316, %p317
      %p319 = scmp.ne.s32.totalorder %s308, %s309
      %p320 = scmp.eq.s32.totalorder %s28, 0
      %p321 = por %p319, %p320
      %p322 = scmp.ne.s32.totalorder %s308, %s309
      %p323 = scmp.eq.s32.totalorder %s29, 1
      %p324 = por %p322, %p323
      %p326 = scmp.ne.s32.totalorder %s309, %s325
      %p327 = scmp.eq.s32.totalorder %s29, 0
      %p328 = por %p326, %p327
      %s329 = ssub.s32 %s31, %s38
      %p330 = scmp.eq.s32.totalorder %s329, 0
      %s332 = sadd.s32 %s331, 1
      %s333 = scalar_select %p330, %s331, %s332
      %p336 = pneg %p330
      %p337 = scmp.eq.s32.totalorder %s23, 1
      %p338 = por %p336, %p337
      %p339 = scmp.ne.s32.totalorder %s331, %s334
      %p340 = scmp.eq.s32.totalorder %s23, 0
      %p341 = por %p339, %p340
      %p342 = scmp.ne.s32.totalorder %s331, %s334
      %p343 = scmp.eq.s32.totalorder %s28, 1
      %p344 = por %p342, %p343
      %p345 = scmp.ne.s32.totalorder %s334, %s335
      %p346 = scmp.eq.s32.totalorder %s28, 0
      %p347 = por %p345, %p346
      %p348 = scmp.ne.s32.totalorder %s334, %s335
      %p349 = scmp.eq.s32.totalorder %s29, 1
      %p350 = por %p348, %p349
      %p352 = scmp.ne.s32.totalorder %s335, %s351
      %p353 = scmp.eq.s32.totalorder %s29, 0
      %p354 = por %p352, %p353
      %s355 = ssub.s32 %s31, %s38
      %p356 = scmp.eq.s32.totalorder %s355, 0
      %s358 = sadd.s32 %s357, 1
      %s359 = scalar_select %p356, %s357, %s358
      %p362 = pneg %p356
      %p363 = scmp.eq.s32.totalorder %s23, 1
      %p364 = por %p362, %p363
      %p365 = scmp.ne.s32.totalorder %s357, %s360
      %p366 = scmp.eq.s32.totalorder %s23, 0
      %p367 = por %p365, %p366
      %p368 = scmp.ne.s32.totalorder %s357, %s360
      %p369 = scmp.eq.s32.totalorder %s28, 1
      %p370 = por %p368, %p369
      %p371 = scmp.ne.s32.totalorder %s360, %s361
      %p372 = scmp.eq.s32.totalorder %s28, 0
      %p373 = por %p371, %p372
      %p374 = scmp.ne.s32.totalorder %s360, %s361
      %p375 = scmp.eq.s32.totalorder %s29, 1
      %p376 = por %p374, %p375
      %p378 = scmp.ne.s32.totalorder %s361, %s377
      %p379 = scmp.eq.s32.totalorder %s29, 0
      %p380 = por %p378, %p379
      %s381 = ssub.s32 %s31, %s38
      %p382 = scmp.eq.s32.totalorder %s381, 0
      %s384 = sadd.s32 %s383, 1
      %s385 = scalar_select %p382, %s383, %s384
      %p388 = pneg %p382
      %p389 = scmp.eq.s32.totalorder %s23, 1
      %p390 = por %p388, %p389
      %p391 = scmp.ne.s32.totalorder %s383, %s386
      %p392 = scmp.eq.s32.totalorder %s23, 0
      %p393 = por %p391, %p392
      %p394 = scmp.ne.s32.totalorder %s383, %s386
      %p395 = scmp.eq.s32.totalorder %s28, 1
      %p396 = por %p394, %p395
      %p397 = scmp.ne.s32.totalorder %s386, %s387
      %p398 = scmp.eq.s32.totalorder %s28, 0
      %p399 = por %p397, %p398
      %p400 = scmp.ne.s32.totalorder %s386, %s387
      %p401 = scmp.eq.s32.totalorder %s29, 1
      %p402 = por %p400, %p401
      %p404 = scmp.ne.s32.totalorder %s387, %s403
      %p405 = scmp.eq.s32.totalorder %s29, 0
      %p406 = por %p404, %p405
      %s407 = ssub.s32 %s30, %s42
      %p408 = scmp.eq.s32.totalorder %s407, 0
      %s410 = sadd.s32 %s409, 1
      %s411 = scalar_select %p408, %s409, %s410
      %p414 = pneg %p408
      %p415 = scmp.eq.s32.totalorder %s23, 1
      %p416 = por %p414, %p415
      %p417 = scmp.ne.s32.totalorder %s409, %s412
      %p418 = scmp.eq.s32.totalorder %s23, 0
      %p419 = por %p417, %p418
      %p420 = scmp.ne.s32.totalorder %s409, %s412
      %p421 = scmp.eq.s32.totalorder %s28, 1
      %p422 = por %p420, %p421
      %p423 = scmp.ne.s32.totalorder %s412, %s413
      %p424 = scmp.eq.s32.totalorder %s28, 0
      %p425 = por %p423, %p424
      %p426 = scmp.ne.s32.totalorder %s412, %s413
      %p427 = scmp.eq.s32.totalorder %s29, 1
      %p428 = por %p426, %p427
      %p430 = scmp.ne.s32.totalorder %s413, %s429
      %p431 = scmp.eq.s32.totalorder %s29, 0
      %p432 = por %p430, %p431
      %p433 = scmp.le.s32.totalorder 1, %s23
      %p434 = scmp.lt.s32.totalorder %s23, 3
      %p435 = pnand %p433, %p434
      %p436 = pneg %p435
      // Predicated region
      $region9: #{tpu_custom_call.1} parent=5 // pred_check
        _
      $region10: #{tpu_custom_call.1} parent=5 // pred_check_branch
        %438 = sbr.rel (%p435) target = $region12
      $region11: #{tpu_custom_call.1} parent=5 // pred_region
        %s439 = ssub.s32 %s23, 1
        // Predicated region
        $region13: #{tpu_custom_call.1} parent=11 // pred_check
          %p440 = pneg %p61
        $region14: #{tpu_custom_call.1} parent=11 // pred_check_branch
          %442 = sbr.rel (%p440) target = $region16
        $region15: #{tpu_custom_call.1} parent=11 // pred_region
          %s443 = smul.u32 2, %s32
          %s445 = ssub.s32 256, 256
          %446 = vsyncadd [#allocation4], %s445
          %s447 = smul.addr %s443, 128
          %s448 = scalar_lea.hbm %s0, %s447
          %s449 = sshll.u32 [#allocation3], 4
          %s450 = int_to_ptr.vmem [resolvable:$true] %s449
          %455 = dma.hbm_to_vmem [thread:$0]  %s448, 256, %s450, [#allocation4], 128, 128, 8
        $region16: #{tpu_custom_call.1} parent=11 // pred_fallthru
          _
        // Predicated region
        $region17: #{tpu_custom_call.1} parent=11 // pred_check
          %p456 = pneg %p87
        $region18: #{tpu_custom_call.1} parent=11 // pred_check_branch
          %458 = sbr.rel (%p456) target = $region20
        $region19: #{tpu_custom_call.1} parent=11 // pred_region
          %s459 = smul.u32 2, %s32
          %s461 = ssub.s32 32, 32
          %462 = vsyncadd [#allocation7], %s461
          %s463 = smul.addr %s459, 16
          %s464 = scalar_lea.hbm %s1, %s463
          %s465 = sshll.u32 [#allocation6], 4
          %s466 = int_to_ptr.vmem [resolvable:$true] %s465
          %471 = dma.hbm_to_vmem [thread:$0]  %s464, 32, %s466, [#allocation7], 16, 16, 1
        $region20: #{tpu_custom_call.1} parent=11 // pred_fallthru
          _
      $region12: #{tpu_custom_call.1} parent=5 // pred_fallthru
        _
      %p472 = scmp.lt.s32.totalorder %s23, 2
      // Predicated region
      $region21: #{tpu_custom_call.1} parent=5 // pred_check
        %p473 = pneg %p472
      $region22: #{tpu_custom_call.1} parent=5 // pred_check_branch
        %475 = sbr.rel (%p473) target = $region24
      $region23: #{tpu_custom_call.1} parent=5 // pred_region
        // Predicated region
        $region25: #{tpu_custom_call.1} parent=23 // pred_check
          %p476 = pneg %p107
        $region26: #{tpu_custom_call.1} parent=23 // pred_check_branch
          %478 = sbr.rel (%p476) target = $region28
        $region27: #{tpu_custom_call.1} parent=23 // pred_region
          %p479 = scmp.lt.s32.totalorder %s31, 1
          %s480 = scalar_select %p479, %s31, 1
          %s481 = smul.addr %s480, 4
          %s482 = smul.addr %s481, 4
          %s483 = scalar_lea.vmem %s2, %s482
        $region28: #{tpu_custom_call.1} parent=23 // pred_fallthru
          _
        // Predicated region
        $region29: #{tpu_custom_call.1} parent=23 // pred_check
          %p484 = pneg %p133
        $region30: #{tpu_custom_call.1} parent=23 // pred_check_branch
          %486 = sbr.rel (%p484) target = $region32
        $region31: #{tpu_custom_call.1} parent=23 // pred_region
          %p487 = scmp.lt.s32.totalorder %s31, 1
          %s488 = scalar_select %p487, %s31, 1
          %s489 = scalar_lea.vmem %s3, %s488
        $region32: #{tpu_custom_call.1} parent=23 // pred_fallthru
          _
        // Predicated region
        $region33: #{tpu_custom_call.1} parent=23 // pred_check
          %p490 = pneg %p159
        $region34: #{tpu_custom_call.1} parent=23 // pred_check_branch
          %492 = sbr.rel (%p490) target = $region36
        $region35: #{tpu_custom_call.1} parent=23 // pred_region
          %p493 = scmp.lt.s32.totalorder %s31, 1
          %s494 = scalar_select %p493, %s31, 1
          %s495 = smul.addr %s494, 4
          %s496 = smul.addr %s495, 4
          %s497 = scalar_lea.vmem %s4, %s496
        $region36: #{tpu_custom_call.1} parent=23 // pred_fallthru
          _
        // Predicated region
        $region37: #{tpu_custom_call.1} parent=23 // pred_check
          %p498 = pneg %p185
        $region38: #{tpu_custom_call.1} parent=23 // pred_check_branch
          %500 = sbr.rel (%p498) target = $region40
        $region39: #{tpu_custom_call.1} parent=23 // pred_region
          %p501 = scmp.lt.s32.totalorder %s31, 1
          %s502 = scalar_select %p501, %s31, 1
          %s503 = scalar_lea.vmem %s5, %s502
        $region40: #{tpu_custom_call.1} parent=23 // pred_fallthru
          _
        // Predicated region
        $region41: #{tpu_custom_call.1} parent=23 // pred_check
          %p504 = pneg %p211
        $region42: #{tpu_custom_call.1} parent=23 // pred_check_branch
          %506 = sbr.rel (%p504) target = $region44
        $region43: #{tpu_custom_call.1} parent=23 // pred_region
          %p507 = scmp.lt.s32.totalorder %s31, 1
          %s508 = scalar_select %p507, %s31, 1
          %s509 = scalar_lea.vmem %s6, %s508
        $region44: #{tpu_custom_call.1} parent=23 // pred_fallthru
          _
        // Predicated region
        $region45: #{tpu_custom_call.1} parent=23 // pred_check
          %p510 = pneg %p237
        $region46: #{tpu_custom_call.1} parent=23 // pred_check_branch
          %512 = sbr.rel (%p510) target = $region48
        $region47: #{tpu_custom_call.1} parent=23 // pred_region
          %p513 = scmp.lt.s32.totalorder %s31, 1
          %s514 = scalar_select %p513, %s31, 1
          %s515 = scalar_lea.vmem %s7, %s514
        $region48: #{tpu_custom_call.1} parent=23 // pred_fallthru
          _
        // Predicated region
        $region49: #{tpu_custom_call.1} parent=23 // pred_check
          %p516 = pneg %p263
        $region50: #{tpu_custom_call.1} parent=23 // pred_check_branch
          %518 = sbr.rel (%p516) target = $region52
        $region51: #{tpu_custom_call.1} parent=23 // pred_region
          %p519 = scmp.lt.s32.totalorder %s31, 1
          %s520 = scalar_select %p519, %s31, 1
          %s521 = smul.addr %s520, 4
          %s522 = smul.addr %s521, 4
          %s523 = scalar_lea.vmem %s8, %s522
        $region52: #{tpu_custom_call.1} parent=23 // pred_fallthru
          _
        // Predicated region
        $region53: #{tpu_custom_call.1} parent=23 // pred_check
          %p524 = pneg %p289
        $region54: #{tpu_custom_call.1} parent=23 // pred_check_branch
          %526 = sbr.rel (%p524) target = $region56
        $region55: #{tpu_custom_call.1} parent=23 // pred_region
          %p527 = scmp.lt.s32.totalorder %s31, 1
          %s528 = scalar_select %p527, %s31, 1
          %s529 = scalar_lea.vmem %s9, %s528
        $region56: #{tpu_custom_call.1} parent=23 // pred_fallthru
          _
        // Predicated region
        $region57: #{tpu_custom_call.1} parent=23 // pred_check
          %p530 = pneg %p315
        $region58: #{tpu_custom_call.1} parent=23 // pred_check_branch
          %532 = sbr.rel (%p530) target = $region60
        $region59: #{tpu_custom_call.1} parent=23 // pred_region
          %p533 = scmp.lt.s32.totalorder %s31, 1
          %s534 = scalar_select %p533, %s31, 1
          %s535 = smul.addr %s534, 8
          %s536 = smul.addr %s535, 4
          %s537 = scalar_lea.vmem %s10, %s536
        $region60: #{tpu_custom_call.1} parent=23 // pred_fallthru
          _
        // Predicated region
        $region61: #{tpu_custom_call.1} parent=23 // pred_check
          %p538 = pneg %p341
        $region62: #{tpu_custom_call.1} parent=23 // pred_check_branch
          %540 = sbr.rel (%p538) target = $region64
        $region63: #{tpu_custom_call.1} parent=23 // pred_region
          %p541 = scmp.lt.s32.totalorder %s31, 1
          %s542 = scalar_select %p541, %s31, 1
          %s543 = scalar_lea.vmem %s11, %s542
        $region64: #{tpu_custom_call.1} parent=23 // pred_fallthru
          _
        // Predicated region
        $region65: #{tpu_custom_call.1} parent=23 // pred_check
          %p544 = pneg %p367
        $region66: #{tpu_custom_call.1} parent=23 // pred_check_branch
          %546 = sbr.rel (%p544) target = $region68
        $region67: #{tpu_custom_call.1} parent=23 // pred_region
          %p547 = scmp.lt.s32.totalorder %s31, 1
          %s548 = scalar_select %p547, %s31, 1
          %s549 = scalar_lea.vmem %s12, %s548
        $region68: #{tpu_custom_call.1} parent=23 // pred_fallthru
          _
        // Predicated region
        $region69: #{tpu_custom_call.1} parent=23 // pred_check
          %p550 = pneg %p393
        $region70: #{tpu_custom_call.1} parent=23 // pred_check_branch
          %552 = sbr.rel (%p550) target = $region72
        $region71: #{tpu_custom_call.1} parent=23 // pred_region
          %p553 = scmp.lt.s32.totalorder %s31, 1
          %s554 = scalar_select %p553, %s31, 1
          %s555 = scalar_lea.vmem %s13, %s554
        $region72: #{tpu_custom_call.1} parent=23 // pred_fallthru
          _
      $region24: #{tpu_custom_call.1} parent=5 // pred_fallthru
        _
      %p556 = scmp.le.s32.totalorder 1, %s23
      %p557 = scmp.lt.s32.totalorder %s23, 3
      %p558 = pnand %p556, %p557
      %p559 = pneg %p558
      // Predicated region
      $region73: #{tpu_custom_call.1} parent=5 // pred_check
        _
      $region74: #{tpu_custom_call.1} parent=5 // pred_check_branch
        %561 = sbr.rel (%p558) target = $region76
      $region75: #{tpu_custom_call.1} parent=5 // pred_region
        %s562 = ssub.s32 %s23, 1
        // Predicated region
        $region77: #{tpu_custom_call.1} parent=75 // pred_check
          %p563 = pneg %p61
        $region78: #{tpu_custom_call.1} parent=75 // pred_check_branch
          %565 = sbr.rel (%p563) target = $region80
        $region79: #{tpu_custom_call.1} parent=75 // pred_region
          %566 = dma.done [#allocation4], 256
        $region80: #{tpu_custom_call.1} parent=75 // pred_fallthru
          _
        // Predicated region
        $region81: #{tpu_custom_call.1} parent=75 // pred_check
          %p567 = pneg %p87
        $region82: #{tpu_custom_call.1} parent=75 // pred_check_branch
          %569 = sbr.rel (%p567) target = $region84
        $region83: #{tpu_custom_call.1} parent=75 // pred_region
          %570 = dma.done [#allocation7], 32
        $region84: #{tpu_custom_call.1} parent=75 // pred_fallthru
          _
        %p571 = pneg %p61
        %p572 = pneg %p58
        %p573 = pneg %p87
        %p574 = pneg %p84
        %p575 = scmp.lt.s32.totalorder %s33, 1
        %s576 = scalar_select %p575, %s33, 1
        %s577 = smul.addr %s576, 4
        %s578 = smul.addr %s577, 4
        %s579 = scalar_lea.vmem %s2, %s578
        %p580 = pneg %p113
        %p581 = pneg %p110
        %p582 = scmp.lt.s32.totalorder %s33, 1
        %s583 = scalar_select %p582, %s33, 1
        %s584 = scalar_lea.vmem %s3, %s583
        %p585 = pneg %p139
        %p586 = pneg %p136
        %p587 = scmp.lt.s32.totalorder %s33, 1
        %s588 = scalar_select %p587, %s33, 1
        %s589 = smul.addr %s588, 4
        %s590 = smul.addr %s589, 4
        %s591 = scalar_lea.vmem %s4, %s590
        %p592 = pneg %p165
        %p593 = pneg %p162
        %p594 = scmp.lt.s32.totalorder %s33, 1
        %s595 = scalar_select %p594, %s33, 1
        %s596 = scalar_lea.vmem %s5, %s595
        %p597 = pneg %p191
        %p598 = pneg %p188
        %p599 = scmp.lt.s32.totalorder %s33, 1
        %s600 = scalar_select %p599, %s33, 1
        %s601 = scalar_lea.vmem %s6, %s600
        %p602 = pneg %p217
        %p603 = pneg %p214
        %p604 = scmp.lt.s32.totalorder %s33, 1
        %s605 = scalar_select %p604, %s33, 1
        %s606 = scalar_lea.vmem %s7, %s605
        %p607 = pneg %p243
        %p608 = pneg %p240
        %p609 = scmp.lt.s32.totalorder %s33, 1
        %s610 = scalar_select %p609, %s33, 1
        %s611 = smul.addr %s610, 4
        %s612 = smul.addr %s611, 4
        %s613 = scalar_lea.vmem %s8, %s612
        %p614 = pneg %p269
        %p615 = pneg %p266
        %p616 = scmp.lt.s32.totalorder %s33, 1
        %s617 = scalar_select %p616, %s33, 1
        %s618 = scalar_lea.vmem %s9, %s617
        %p619 = pneg %p295
        %p620 = pneg %p292
        %p621 = scmp.lt.s32.totalorder %s33, 1
        %s622 = scalar_select %p621, %s33, 1
        %s623 = smul.addr %s622, 8
        %s624 = smul.addr %s623, 4
        %s625 = scalar_lea.vmem %s10, %s624
        %p626 = pneg %p321
        %p627 = pneg %p318
        %p628 = scmp.lt.s32.totalorder %s33, 1
        %s629 = scalar_select %p628, %s33, 1
        %s630 = scalar_lea.vmem %s11, %s629
        %p631 = pneg %p347
        %p632 = pneg %p344
        %p633 = scmp.lt.s32.totalorder %s33, 1
        %s634 = scalar_select %p633, %s33, 1
        %s635 = scalar_lea.vmem %s12, %s634
        %p636 = pneg %p373
        %p637 = pneg %p370
        %p638 = scmp.lt.s32.totalorder %s33, 1
        %s639 = scalar_select %p638, %s33, 1
        %s640 = scalar_lea.vmem %s13, %s639
        %p641 = pneg %p399
        %p642 = pneg %p396
        %p643 = pneg %p425
        %p644 = pneg %p422
        %s645 = smul.u32 2, %s32
        %s646 = smul.u32 2, %s32
        %p647 = scmp.lt.s32.totalorder %s33, 1
        %s648 = scalar_select %p647, %s33, 1
        %s649 = smul.addr %s648, 4
        %s650 = smul.addr %s649, 4
        %s651 = scalar_lea.vmem %s2, %s650
        %p652 = scmp.lt.s32.totalorder %s33, 1
        %s653 = scalar_select %p652, %s33, 1
        %s654 = scalar_lea.vmem %s3, %s653
        %p655 = scmp.lt.s32.totalorder %s33, 1
        %s656 = scalar_select %p655, %s33, 1
        %s657 = smul.addr %s656, 4
        %s658 = smul.addr %s657, 4
        %s659 = scalar_lea.vmem %s4, %s658
        %p660 = scmp.lt.s32.totalorder %s33, 1
        %s661 = scalar_select %p660, %s33, 1
        %s662 = scalar_lea.vmem %s5, %s661
        %p663 = scmp.lt.s32.totalorder %s33, 1
        %s664 = scalar_select %p663, %s33, 1
        %s665 = scalar_lea.vmem %s6, %s664
        %p666 = scmp.lt.s32.totalorder %s33, 1
        %s667 = scalar_select %p666, %s33, 1
        %s668 = scalar_lea.vmem %s7, %s667
        %p669 = scmp.lt.s32.totalorder %s33, 1
        %s670 = scalar_select %p669, %s33, 1
        %s671 = smul.addr %s670, 4
        %s672 = smul.addr %s671, 4
        %s673 = scalar_lea.vmem %s8, %s672
        %p674 = scmp.lt.s32.totalorder %s33, 1
        %s675 = scalar_select %p674, %s33, 1
        %s676 = scalar_lea.vmem %s9, %s675
        %p677 = scmp.lt.s32.totalorder %s33, 1
        %s678 = scalar_select %p677, %s33, 1
        %s679 = smul.addr %s678, 8
        %s680 = smul.addr %s679, 4
        %s681 = scalar_lea.vmem %s10, %s680
        %p682 = scmp.lt.s32.totalorder %s33, 1
        %s683 = scalar_select %p682, %s33, 1
        %s684 = scalar_lea.vmem %s11, %s683
        %p685 = scmp.lt.s32.totalorder %s33, 1
        %s686 = scalar_select %p685, %s33, 1
        %s687 = scalar_lea.vmem %s12, %s686
        %p688 = scmp.lt.s32.totalorder %s33, 1
        %s689 = scalar_select %p688, %s33, 1
        %s690 = scalar_lea.vmem %s13, %s689
        %s691 = smul.u32 2, %s32
        %p693 = scmp.eq.s32.totalorder %s33, 0
        // Predicated region
        $region85: #{tpu_custom_call.1} parent=75 // pred_check
          %p694 = pneg %p693
        $region86: #{tpu_custom_call.1} parent=75 // pred_check_branch
          %696 = sbr.rel (%p694) target = $region88
        $region87: #{tpu_custom_call.1} parent=75 // pred_region
          %v697 = vld [vmem:[#allocation3] sm:$0xff]
          %v698 = vld [vmem:[#allocation3 + $0x8] sm:$0xff]
          %vm699 = vcmask 261120
          %700 = vst.msk [vmem:[#allocation8] sm:$0xff] %vm699, %v697
          %701 = vst.msk [vmem:[#allocation8 + $0x8] sm:$0xff] %vm699, %v698
        $region88: #{tpu_custom_call.1} parent=75 // pred_fallthru
          _
        %v702 = vld [vmem:[#allocation8] sm:$0xff]
        %v703 = vld [vmem:[#allocation8 + $0x8] sm:$0xff]
        %v704 = vpack.c.bf16 %v703, %v702
        %v705 = vld [vmem:[%s651] sm:$0xf]
        %v706 = vld [vmem:[%s651 + $0x4] sm:$0xf]
        %v707 = vld [vmem:[%s651 + $0x8] sm:$0xf]
        %v708 = vld [vmem:[%s651 + $0xc] sm:$0xf]
        %v709 = vld [vmem:[%s654] sm:$0x1]
        %v711 = vlaneseq
        %v712 = vshrl.u32 %v711, 7
        %v713 = vsub.s32 0, %v712
        %v714 = vrot.slane %v709, %v713
        %v720 = vunpack.c.l.b16 %v705
        %v721 = vunpack.c.l.b16 %v706
        %v722 = vunpack.c.l.b16 %v707
        %v723 = vunpack.c.l.b16 %v708
        %v724 = vpack.c.b16 %v721, %v720
        %v725 = vpack.c.b16 %v723, %v722
        %vm728 = vcmask 261120
        %v730 = vsel %vm728, %v704, 0
        %732 = vmatprep.subr.bf16.mxu0 0
        %733 = vmatpush1.bf16.msra.mxu0 0
        %734 = vmatprep.subr.bf16.mxu0 0
        %735 = vmatpush1.bf16.msra.mxu0 0
        %736 = vmatprep.subr.bf16.mxu0 0
        %737 = vmatpush1.bf16.msra.mxu0 0
        %738 = vmatprep.subr.bf16.mxu0 0
        %739 = vmatpush1.bf16.msra.mxu0 0
        %740 = vmatprep.subr.bf16.mxu0 0
        %741 = vmatpush1.bf16.msra.mxu0 0
        %742 = vmatprep.subr.bf16.mxu0 0
        %743 = vmatpush1.bf16.msra.mxu0 0
        %744 = vmatprep.subr.bf16.mxu0 0
        %745 = vmatpush1.bf16.msra.mxu0 %v725
        %746 = vmatprep.subr.bf16.mxu0 0
        %747 = vmatpush1.bf16.msra.mxu0 %v724
        %748 = vmatprep.subr.bf16.mxu0 0
        %749 = vmatpush2.bf16.msra.mxu0 0
        %750 = vmatprep.subr.bf16.mxu0 0
        %751 = vmatpush2.bf16.msra.mxu0 0
        %752 = vmatprep.subr.bf16.mxu0 0
        %753 = vmatpush2.bf16.msra.mxu0 0
        %754 = vmatprep.subr.bf16.mxu0 0
        %755 = vmatpush2.bf16.msra.mxu0 0
        %756 = vmatprep.subr.bf16.mxu0 0
        %757 = vmatpush2.bf16.msra.mxu0 0
        %758 = vmatprep.subr.bf16.mxu0 0
        %759 = vmatpush2.bf16.msra.mxu0 0
        %760 = vmatprep.subr.bf16.mxu0 0
        %761 = vmatpush2.bf16.msra.mxu0 0
        %762 = vmatprep.subr.bf16.mxu0 0
        %763 = vmatpush2.bf16.msra.mxu0 0
        %764 = vmatprep.mubr.bf16.mxu0 0
        %765 = vmatmul.mubr.bf16.gmra.mxu0 %v730
        %v766 = vpop.f32.mrf.mxu0
        %v767 = vadd.f32 %v714, %v766
        %v768 = vpop.f32.mrf.mxu0
        %v769 = vpop.f32.mrf.mxu0
        %v770 = vadd.f32 %v714, %v769
        %v771 = vpop.f32.mrf.mxu0
        %772 = vdwg.mxu0
        %v773 = vmul.f32 %v767, 0.35355338
        %v774 = vmul.f32 %v770, 0.35355338
        %v775 = vpack.c.bf16 %v774, %v773
        %v777 = vunpack.c.l.b16 %v775
        %v778 = vunpack.c.h.b16 %v775
        %v779 = vpack.c.b16 %v777, %v777
        %v780 = vpack.c.b16 %v778, %v778
        %v781 = vpack.c.bf16 %v770, %v767
        %v783 = vunpack.c.l.b16 %v781
        %v784 = vunpack.c.h.b16 %v781
        %v785 = vld [vmem:[#allocation6] sm:$0x1]
        %v786 = vld [vmem:[#allocation6 + $0x1] sm:$0x1]
        %v789 = vlaneseq
        %v790 = vshrl.u32 %v789, 7
        %v791 = vsub.s32 0, %v790
        %v792 = vrot.slane %v785, %v791
        %v793 = vlaneseq
        %v794 = vshrl.u32 %v793, 7
        %v795 = vsub.s32 0, %v794
        %v796 = vrot.slane %v786, %v795
        %v799 = vpack.c.b16 %v783, %v783
        %800 = vrot.lane.b32.xlu0 %v799, 96
        %v801 = vpop.permute.xlu0 %800
        %vm802 = vcmask 64512
        %v804 = vsel %vm802, %v779, 0
        %v807 = vsel %vm802, %v801, 0
        %809 = vmatprep.subr.bf16.mxu0 0
        %810 = vmatpush1.bf16.xpose.msra.mxu0 0
        %811 = vmatprep.subr.bf16.mxu0 0
        %812 = vmatpush1.bf16.xpose.msra.mxu0 0
        %813 = vmatprep.subr.bf16.mxu0 0
        %814 = vmatpush1.bf16.xpose.msra.mxu0 0
        %815 = vmatprep.subr.bf16.mxu0 0
        %816 = vmatpush1.bf16.xpose.msra.mxu0 0
        %817 = vmatprep.subr.bf16.mxu0 0
        %818 = vmatpush1.bf16.xpose.msra.mxu0 0
        %819 = vmatprep.subr.bf16.mxu0 0
        %820 = vmatpush1.bf16.xpose.msra.mxu0 0
        %821 = vmatprep.subr.bf16.mxu0 0
        %822 = vmatpush1.bf16.xpose.msra.mxu0 0
        %823 = vmatprep.subr.bf16.mxu0 0
        %824 = vmatpush1.bf16.xpose.msra.mxu0 %v807
        %825 = vmatprep.subr.bf16.mxu0 0
        %826 = vmatpush2.bf16.xpose.msra.mxu0 0
        %827 = vmatprep.subr.bf16.mxu0 0
        %828 = vmatpush2.bf16.xpose.msra.mxu0 0
        %829 = vmatprep.subr.bf16.mxu0 0
        %830 = vmatpush2.bf16.xpose.msra.mxu0 0
        %831 = vmatprep.subr.bf16.mxu0 0
        %832 = vmatpush2.bf16.xpose.msra.mxu0 0
        %833 = vmatprep.subr.bf16.mxu0 0
        %834 = vmatpush2.bf16.xpose.msra.mxu0 0
        %835 = vmatprep.subr.bf16.mxu0 0
        %836 = vmatpush2.bf16.xpose.msra.mxu0 0
        %837 = vmatprep.subr.bf16.mxu0 0
        %838 = vmatpush2.bf16.xpose.msra.mxu0 0
        %839 = vmatprep.subr.bf16.mxu0 0
        %840 = vmatpush2.bf16.xpose.msra.mxu0 0
        %841 = vmatprep.mubr.bf16.mxu0 0
        %842 = vmatmul.mubr.bf16.gmra.mxu0 %v804
        %v843 = vpop.f32.mrf.mxu0
        %v844 = vadd.f32 %v792, %v843
        %v845 = vpop.f32.mrf.mxu0
        %v846 = vpop.f32.mrf.mxu0
        %v847 = vpop.f32.mrf.mxu0
        %848 = vdwg.mxu0
        %v849 = vpack.c.b16 %v784, %v784
        %850 = vrot.lane.b32.xlu0 %v849, 96
        %v851 = vpop.permute.xlu0 %850
        %v853 = vsel %vm802, %v780, 0
        %v856 = vsel %vm802, %v851, 0
        %858 = vmatprep.subr.bf16.mxu0 0
        %859 = vmatpush1.bf16.xpose.msra.mxu0 0
        %860 = vmatprep.subr.bf16.mxu0 0
        %861 = vmatpush1.bf16.xpose.msra.mxu0 0
        %862 = vmatprep.subr.bf16.mxu0 0
        %863 = vmatpush1.bf16.xpose.msra.mxu0 0
        %864 = vmatprep.subr.bf16.mxu0 0
        %865 = vmatpush1.bf16.xpose.msra.mxu0 0
        %866 = vmatprep.subr.bf16.mxu0 0
        %867 = vmatpush1.bf16.xpose.msra.mxu0 0
        %868 = vmatprep.subr.bf16.mxu0 0
        %869 = vmatpush1.bf16.xpose.msra.mxu0 0
        %870 = vmatprep.subr.bf16.mxu0 0
        %871 = vmatpush1.bf16.xpose.msra.mxu0 0
        %872 = vmatprep.subr.bf16.mxu0 0
        %873 = vmatpush1.bf16.xpose.msra.mxu0 %v856
        %874 = vmatprep.subr.bf16.mxu0 0
        %875 = vmatpush2.bf16.xpose.msra.mxu0 0
        %876 = vmatprep.subr.bf16.mxu0 0
        %877 = vmatpush2.bf16.xpose.msra.mxu0 0
        %878 = vmatprep.subr.bf16.mxu0 0
        %879 = vmatpush2.bf16.xpose.msra.mxu0 0
        %880 = vmatprep.subr.bf16.mxu0 0
        %881 = vmatpush2.bf16.xpose.msra.mxu0 0
        %882 = vmatprep.subr.bf16.mxu0 0
        %883 = vmatpush2.bf16.xpose.msra.mxu0 0
        %884 = vmatprep.subr.bf16.mxu0 0
        %885 = vmatpush2.bf16.xpose.msra.mxu0 0
        %886 = vmatprep.subr.bf16.mxu0 0
        %887 = vmatpush2.bf16.xpose.msra.mxu0 0
        %888 = vmatprep.subr.bf16.mxu0 0
        %889 = vmatpush2.bf16.xpose.msra.mxu0 0
        %890 = vmatprep.mubr.bf16.mxu0 0
        %891 = vmatmul.mubr.bf16.gmra.mxu0 %v853
        %v892 = vpop.f32.mrf.mxu0
        %v893 = vadd.f32 %v796, %v892
        %v894 = vpop.f32.mrf.mxu0
        %v895 = vpop.f32.mrf.mxu0
        %v896 = vpop.f32.mrf.mxu0
        %897 = vdwg.mxu0
        %v898 = vsel %vm802, %v844, -inf
        %899 = vmax.xlane.f32.xlu0 %v898
        %v900 = vpop.xlane.xlu0 %899
        %v901 = vsel %vm802, %v893, -inf
        %902 = vmax.xlane.f32.xlu0 %v901
        %v903 = vpop.xlane.xlu0 %902
        %v904 = vsub.f32 %v844, %v900
        %v905 = vsub.f32 %v893, %v903
        %v906 = vmul.f32 %v904, 1.442695
        %v907 = vpow.pop %v906
        %v908 = vmul.f32 %v905, 1.442695
        %v909 = vpow.pop %v908
        %v910 = vsel %vm802, %v907, 0.0
        %911 = vadd.xlane.f32.xlu0 %v910
        %v912 = vpop.xlane.xlu0 %911
        %v913 = vsel %vm802, %v909, 0.0
        %914 = vadd.xlane.f32.xlu0 %v913
        %v915 = vpop.xlane.xlu0 %914
        %v916 = vrcp.pop %v912
        %v917 = vrcp.pop %v915
        %v918 = vmul.f32 %v907, %v916
        %v919 = vmul.f32 %v909, %v917
        %v920 = vpack.c.bf16 %v918, %v918
        %v921 = vpack.c.bf16 %v919, %v919
        %922 = vrot.lane.b32.xlu0 %v799, 64
        %v923 = vpop.permute.xlu0 %922
        %v925 = vsel %vm802, %v920, 0
        %vm927 = vcmask 1043456
        %v929 = vsel %vm927, %v923, 0
        %931 = vmatprep.subr.bf16.mxu0 0
        %932 = vmatpush1.bf16.msra.mxu0 0
        %933 = vmatprep.subr.bf16.mxu0 0
        %934 = vmatpush1.bf16.msra.mxu0 0
        %935 = vmatprep.subr.bf16.mxu0 0
        %936 = vmatpush1.bf16.msra.mxu0 0
        %937 = vmatprep.subr.bf16.mxu0 0
        %938 = vmatpush1.bf16.msra.mxu0 0
        %939 = vmatprep.subr.bf16.mxu0 0
        %940 = vmatpush1.bf16.msra.mxu0 0
        %941 = vmatprep.subr.bf16.mxu0 0
        %942 = vmatpush1.bf16.msra.mxu0 0
        %943 = vmatprep.subr.bf16.mxu0 0
        %944 = vmatpush1.bf16.msra.mxu0 0
        %945 = vmatprep.subr.bf16.mxu0 0
        %946 = vmatpush1.bf16.msra.mxu0 %v929
        %947 = vmatprep.subr.bf16.mxu0 0
        %948 = vmatpush2.bf16.msra.mxu0 0
        %949 = vmatprep.subr.bf16.mxu0 0
        %950 = vmatpush2.bf16.msra.mxu0 0
        %951 = vmatprep.subr.bf16.mxu0 0
        %952 = vmatpush2.bf16.msra.mxu0 0
        %953 = vmatprep.subr.bf16.mxu0 0
        %954 = vmatpush2.bf16.msra.mxu0 0
        %955 = vmatprep.subr.bf16.mxu0 0
        %956 = vmatpush2.bf16.msra.mxu0 0
        %957 = vmatprep.subr.bf16.mxu0 0
        %958 = vmatpush2.bf16.msra.mxu0 0
        %959 = vmatprep.subr.bf16.mxu0 0
        %960 = vmatpush2.bf16.msra.mxu0 0
        %961 = vmatprep.subr.bf16.mxu0 0
        %962 = vmatpush2.bf16.msra.mxu0 0
        %963 = vmatprep.mubr.bf16.mxu0 0
        %964 = vmatmul.mubr.bf16.gmra.mxu0 %v925
        %v965 = vpop.f32.mrf.mxu0
        %v966 = vadd.f32 0.0, %v965
        %v967 = vpop.f32.mrf.mxu0
        %v968 = vpop.f32.mrf.mxu0
        %v969 = vpop.f32.mrf.mxu0
        %970 = vdwg.mxu0
        %971 = vrot.lane.b32.xlu0 %v849, 64
        %v972 = vpop.permute.xlu0 %971
        %v974 = vsel %vm802, %v921, 0
        %v977 = vsel %vm927, %v972, 0
        %979 = vmatprep.subr.bf16.mxu0 0
        %980 = vmatpush1.bf16.msra.mxu0 0
        %981 = vmatprep.subr.bf16.mxu0 0
        %982 = vmatpush1.bf16.msra.mxu0 0
        %983 = vmatprep.subr.bf16.mxu0 0
        %984 = vmatpush1.bf16.msra.mxu0 0
        %985 = vmatprep.subr.bf16.mxu0 0
        %986 = vmatpush1.bf16.msra.mxu0 0
        %987 = vmatprep.subr.bf16.mxu0 0
        %988 = vmatpush1.bf16.msra.mxu0 0
        %989 = vmatprep.subr.bf16.mxu0 0
        %990 = vmatpush1.bf16.msra.mxu0 0
        %991 = vmatprep.subr.bf16.mxu0 0
        %992 = vmatpush1.bf16.msra.mxu0 0
        %993 = vmatprep.subr.bf16.mxu0 0
        %994 = vmatpush1.bf16.msra.mxu0 %v977
        %995 = vmatprep.subr.bf16.mxu0 0
        %996 = vmatpush2.bf16.msra.mxu0 0
        %997 = vmatprep.subr.bf16.mxu0 0
        %998 = vmatpush2.bf16.msra.mxu0 0
        %999 = vmatprep.subr.bf16.mxu0 0
        %1000 = vmatpush2.bf16.msra.mxu0 0
        %1001 = vmatprep.subr.bf16.mxu0 0
        %1002 = vmatpush2.bf16.msra.mxu0 0
        %1003 = vmatprep.subr.bf16.mxu0 0
        %1004 = vmatpush2.bf16.msra.mxu0 0
        %1005 = vmatprep.subr.bf16.mxu0 0
        %1006 = vmatpush2.bf16.msra.mxu0 0
        %1007 = vmatprep.subr.bf16.mxu0 0
        %1008 = vmatpush2.bf16.msra.mxu0 0
        %1009 = vmatprep.subr.bf16.mxu0 0
        %1010 = vmatpush2.bf16.msra.mxu0 0
        %1011 = vmatprep.mubr.bf16.mxu0 0
        %1012 = vmatmul.mubr.bf16.gmra.mxu0 %v974
        %v1013 = vpop.f32.mrf.mxu0
        %v1014 = vadd.f32 0.0, %v1013
        %v1015 = vpop.f32.mrf.mxu0
        %v1016 = vpop.f32.mrf.mxu0
        %v1017 = vpop.f32.mrf.mxu0
        %1018 = vdwg.mxu0
        %v1019 = vpack.c.bf16 %v966, %v966
        %v1020 = vpack.c.bf16 %v1014, %v1014
        %vm1021 = vcmask 60416
        %1022 = vst.msk [vmem:[#allocation2] sm:$0xf] %vm1021, %v1019
        %1023 = vst.msk [vmem:[#allocation2 + $0x4] sm:$0xf] %vm1021, %v1020
        %1024 = vrot.lane.b32.xlu0 %v779, 120
        %v1025 = vpop.permute.xlu0 %1024
        %1026 = vrot.lane.b32.xlu0 %v799, 88
        %v1027 = vpop.permute.xlu0 %1026
        %v1029 = vsel %vm802, %v1025, 0
        %v1032 = vsel %vm802, %v1027, 0
        %1034 = vmatprep.subr.bf16.mxu0 0
        %1035 = vmatpush1.bf16.xpose.msra.mxu0 0
        %1036 = vmatprep.subr.bf16.mxu0 0
        %1037 = vmatpush1.bf16.xpose.msra.mxu0 0
        %1038 = vmatprep.subr.bf16.mxu0 0
        %1039 = vmatpush1.bf16.xpose.msra.mxu0 0
        %1040 = vmatprep.subr.bf16.mxu0 0
        %1041 = vmatpush1.bf16.xpose.msra.mxu0 0
        %1042 = vmatprep.subr.bf16.mxu0 0
        %1043 = vmatpush1.bf16.xpose.msra.mxu0 0
        %1044 = vmatprep.subr.bf16.mxu0 0
        %1045 = vmatpush1.bf16.xpose.msra.mxu0 0
        %1046 = vmatprep.subr.bf16.mxu0 0
        %1047 = vmatpush1.bf16.xpose.msra.mxu0 0
        %1048 = vmatprep.subr.bf16.mxu0 0
        %1049 = vmatpush1.bf16.xpose.msra.mxu0 %v1032
        %1050 = vmatprep.subr.bf16.mxu0 0
        %1051 = vmatpush2.bf16.xpose.msra.mxu0 0
        %1052 = vmatprep.subr.bf16.mxu0 0
        %1053 = vmatpush2.bf16.xpose.msra.mxu0 0
        %1054 = vmatprep.subr.bf16.mxu0 0
        %1055 = vmatpush2.bf16.xpose.msra.mxu0 0
        %1056 = vmatprep.subr.bf16.mxu0 0
        %1057 = vmatpush2.bf16.xpose.msra.mxu0 0
        %1058 = vmatprep.subr.bf16.mxu0 0
        %1059 = vmatpush2.bf16.xpose.msra.mxu0 0
        %1060 = vmatprep.subr.bf16.mxu0 0
        %1061 = vmatpush2.bf16.xpose.msra.mxu0 0
        %1062 = vmatprep.subr.bf16.mxu0 0
        %1063 = vmatpush2.bf16.xpose.msra.mxu0 0
        %1064 = vmatprep.subr.bf16.mxu0 0
        %1065 = vmatpush2.bf16.xpose.msra.mxu0 0
        %1066 = vmatprep.mubr.bf16.mxu0 0
        %1067 = vmatmul.mubr.bf16.gmra.mxu0 %v1029
        %v1068 = vpop.f32.mrf.mxu0
        %v1069 = vadd.f32 %v792, %v1068
        %v1070 = vpop.f32.mrf.mxu0
        %v1071 = vpop.f32.mrf.mxu0
        %v1072 = vpop.f32.mrf.mxu0
        %1073 = vdwg.mxu0
        %1074 = vrot.lane.b32.xlu0 %v780, 120
        %v1075 = vpop.permute.xlu0 %1074
        %1076 = vrot.lane.b32.xlu0 %v849, 88
        %v1077 = vpop.permute.xlu0 %1076
        %v1079 = vsel %vm802, %v1075, 0
        %v1082 = vsel %vm802, %v1077, 0
        %1084 = vmatprep.subr.bf16.mxu0 0
        %1085 = vmatpush1.bf16.xpose.msra.mxu0 0
        %1086 = vmatprep.subr.bf16.mxu0 0
        %1087 = vmatpush1.bf16.xpose.msra.mxu0 0
        %1088 = vmatprep.subr.bf16.mxu0 0
        %1089 = vmatpush1.bf16.xpose.msra.mxu0 0
        %1090 = vmatprep.subr.bf16.mxu0 0
        %1091 = vmatpush1.bf16.xpose.msra.mxu0 0
        %1092 = vmatprep.subr.bf16.mxu0 0
        %1093 = vmatpush1.bf16.xpose.msra.mxu0 0
        %1094 = vmatprep.subr.bf16.mxu0 0
        %1095 = vmatpush1.bf16.xpose.msra.mxu0 0
        %1096 = vmatprep.subr.bf16.mxu0 0
        %1097 = vmatpush1.bf16.xpose.msra.mxu0 0
        %1098 = vmatprep.subr.bf16.mxu0 0
        %1099 = vmatpush1.bf16.xpose.msra.mxu0 %v1082
        %1100 = vmatprep.subr.bf16.mxu0 0
        %1101 = vmatpush2.bf16.xpose.msra.mxu0 0
        %1102 = vmatprep.subr.bf16.mxu0 0
        %1103 = vmatpush2.bf16.xpose.msra.mxu0 0
        %1104 = vmatprep.subr.bf16.mxu0 0
        %1105 = vmatpush2.bf16.xpose.msra.mxu0 0
        %1106 = vmatprep.subr.bf16.mxu0 0
        %1107 = vmatpush2.bf16.xpose.msra.mxu0 0
        %1108 = vmatprep.subr.bf16.mxu0 0
        %1109 = vmatpush2.bf16.xpose.msra.mxu0 0
        %1110 = vmatprep.subr.bf16.mxu0 0
        %1111 = vmatpush2.bf16.xpose.msra.mxu0 0
        %1112 = vmatprep.subr.bf16.mxu0 0
        %1113 = vmatpush2.bf16.xpose.msra.mxu0 0
        %1114 = vmatprep.subr.bf16.mxu0 0
        %1115 = vmatpush2.bf16.xpose.msra.mxu0 0
        %1116 = vmatprep.mubr.bf16.mxu0 0
        %1117 = vmatmul.mubr.bf16.gmra.mxu0 %v1079
        %v1118 = vpop.f32.mrf.mxu0
        %v1119 = vadd.f32 %v796, %v1118
        %v1120 = vpop.f32.mrf.mxu0
        %v1121 = vpop.f32.mrf.mxu0
        %v1122 = vpop.f32.mrf.mxu0
        %1123 = vdwg.mxu0
        %v1124 = vsel %vm802, %v1069, -inf
        %1125 = vmax.xlane.f32.xlu0 %v1124
        %v1126 = vpop.xlane.xlu0 %1125
        %v1127 = vsel %vm802, %v1119, -inf
        %1128 = vmax.xlane.f32.xlu0 %v1127
        %v1129 = vpop.xlane.xlu0 %1128
        %v1130 = vsub.f32 %v1069, %v1126
        %v1131 = vsub.f32 %v1119, %v1129
        %v1132 = vmul.f32 %v1130, 1.442695
        %v1133 = vpow.pop %v1132
        %v1134 = vmul.f32 %v1131, 1.442695
        %v1135 = vpow.pop %v1134
        %v1136 = vsel %vm802, %v1133, 0.0
        %1137 = vadd.xlane.f32.xlu0 %v1136
        %v1138 = vpop.xlane.xlu0 %1137
        %v1139 = vsel %vm802, %v1135, 0.0
        %1140 = vadd.xlane.f32.xlu0 %v1139
        %v1141 = vpop.xlane.xlu0 %1140
        %v1142 = vrcp.pop %v1138
        %v1143 = vrcp.pop %v1141
        %v1144 = vmul.f32 %v1133, %v1142
        %v1145 = vmul.f32 %v1135, %v1143
        %v1146 = vpack.c.bf16 %v1144, %v1144
        %v1147 = vpack.c.bf16 %v1145, %v1145
        %1148 = vrot.lane.b32.xlu0 %v799, 56
        %v1149 = vpop.permute.xlu0 %1148
        %v1151 = vsel %vm802, %v1146, 0
        %v1154 = vsel %vm927, %v1149, 0
        %1156 = vmatprep.subr.bf16.mxu0 0
        %1157 = vmatpush1.bf16.msra.mxu0 0
        %1158 = vmatprep.subr.bf16.mxu0 0
        %1159 = vmatpush1.bf16.msra.mxu0 0
        %1160 = vmatprep.subr.bf16.mxu0 0
        %1161 = vmatpush1.bf16.msra.mxu0 0
        %1162 = vmatprep.subr.bf16.mxu0 0
        %1163 = vmatpush1.bf16.msra.mxu0 0
        %1164 = vmatprep.subr.bf16.mxu0 0
        %1165 = vmatpush1.bf16.msra.mxu0 0
        %1166 = vmatprep.subr.bf16.mxu0 0
        %1167 = vmatpush1.bf16.msra.mxu0 0
        %1168 = vmatprep.subr.bf16.mxu0 0
        %1169 = vmatpush1.bf16.msra.mxu0 0
        %1170 = vmatprep.subr.bf16.mxu0 0
        %1171 = vmatpush1.bf16.msra.mxu0 %v1154
        %1172 = vmatprep.subr.bf16.mxu0 0
        %1173 = vmatpush2.bf16.msra.mxu0 0
        %1174 = vmatprep.subr.bf16.mxu0 0
        %1175 = vmatpush2.bf16.msra.mxu0 0
        %1176 = vmatprep.subr.bf16.mxu0 0
        %1177 = vmatpush2.bf16.msra.mxu0 0
        %1178 = vmatprep.subr.bf16.mxu0 0
        %1179 = vmatpush2.bf16.msra.mxu0 0
        %1180 = vmatprep.subr.bf16.mxu0 0
        %1181 = vmatpush2.bf16.msra.mxu0 0
        %1182 = vmatprep.subr.bf16.mxu0 0
        %1183 = vmatpush2.bf16.msra.mxu0 0
        %1184 = vmatprep.subr.bf16.mxu0 0
        %1185 = vmatpush2.bf16.msra.mxu0 0
        %1186 = vmatprep.subr.bf16.mxu0 0
        %1187 = vmatpush2.bf16.msra.mxu0 0
        %1188 = vmatprep.mubr.bf16.mxu0 0
        %1189 = vmatmul.mubr.bf16.gmra.mxu0 %v1151
        %v1190 = vpop.f32.mrf.mxu0
        %v1191 = vadd.f32 0.0, %v1190
        %v1192 = vpop.f32.mrf.mxu0
        %v1193 = vpop.f32.mrf.mxu0
        %v1194 = vpop.f32.mrf.mxu0
        %1195 = vdwg.mxu0
        %1196 = vrot.lane.b32.xlu0 %v849, 56
        %v1197 = vpop.permute.xlu0 %1196
        %v1199 = vsel %vm802, %v1147, 0
        %v1202 = vsel %vm927, %v1197, 0
        %1204 = vmatprep.subr.bf16.mxu0 0
        %1205 = vmatpush1.bf16.msra.mxu0 0
        %1206 = vmatprep.subr.bf16.mxu0 0
        %1207 = vmatpush1.bf16.msra.mxu0 0
        %1208 = vmatprep.subr.bf16.mxu0 0
        %1209 = vmatpush1.bf16.msra.mxu0 0
        %1210 = vmatprep.subr.bf16.mxu0 0
        %1211 = vmatpush1.bf16.msra.mxu0 0
        %1212 = vmatprep.subr.bf16.mxu0 0
        %1213 = vmatpush1.bf16.msra.mxu0 0
        %1214 = vmatprep.subr.bf16.mxu0 0
        %1215 = vmatpush1.bf16.msra.mxu0 0
        %1216 = vmatprep.subr.bf16.mxu0 0
        %1217 = vmatpush1.bf16.msra.mxu0 0
        %1218 = vmatprep.subr.bf16.mxu0 0
        %1219 = vmatpush1.bf16.msra.mxu0 %v1202
        %1220 = vmatprep.subr.bf16.mxu0 0
        %1221 = vmatpush2.bf16.msra.mxu0 0
        %1222 = vmatprep.subr.bf16.mxu0 0
        %1223 = vmatpush2.bf16.msra.mxu0 0
        %1224 = vmatprep.subr.bf16.mxu0 0
        %1225 = vmatpush2.bf16.msra.mxu0 0
        %1226 = vmatprep.subr.bf16.mxu0 0
        %1227 = vmatpush2.bf16.msra.mxu0 0
        %1228 = vmatprep.subr.bf16.mxu0 0
        %1229 = vmatpush2.bf16.msra.mxu0 0
        %1230 = vmatprep.subr.bf16.mxu0 0
        %1231 = vmatpush2.bf16.msra.mxu0 0
        %1232 = vmatprep.subr.bf16.mxu0 0
        %1233 = vmatpush2.bf16.msra.mxu0 0
        %1234 = vmatprep.subr.bf16.mxu0 0
        %1235 = vmatpush2.bf16.msra.mxu0 0
        %1236 = vmatprep.mubr.bf16.mxu0 0
        %1237 = vmatmul.mubr.bf16.gmra.mxu0 %v1199
        %v1238 = vpop.f32.mrf.mxu0
        %v1239 = vadd.f32 0.0, %v1238
        %v1240 = vpop.f32.mrf.mxu0
        %v1241 = vpop.f32.mrf.mxu0
        %v1242 = vpop.f32.mrf.mxu0
        %1243 = vdwg.mxu0
        %v1244 = vpack.c.bf16 %v1191, %v1191
        %v1245 = vpack.c.bf16 %v1239, %v1239
        %v1248 = vunpack.c.l.b16 %v1244
        %v1249 = vunpack.c.l.b16 %v1245
        %v1250 = vpack.c.b16 %v1248, %v1248
        %v1251 = vpack.c.b16 %v1249, %v1249
        %1252 = vrot.lane.b32.xlu0 %v1250, 8
        %v1253 = vpop.permute.xlu0 %1252
        %1254 = vrot.lane.b32.xlu0 %v1251, 8
        %v1255 = vpop.permute.xlu0 %1254
        %vm1258 = vcmask 126016
        %1259 = vst.msk [vmem:[#allocation2] sm:$0xf] %vm1258, %v1253
        %1260 = vst.msk [vmem:[#allocation2 + $0x4] sm:$0xf] %vm1258, %v1255
        %1261 = vrot.lane.b32.xlu0 %v779, 112
        %v1262 = vpop.permute.xlu0 %1261
        %1263 = vrot.lane.b32.xlu0 %v799, 80
        %v1264 = vpop.permute.xlu0 %1263
        %v1266 = vsel %vm802, %v1262, 0
        %v1269 = vsel %vm802, %v1264, 0
        %1271 = vmatprep.subr.bf16.mxu0 0
        %1272 = vmatpush1.bf16.xpose.msra.mxu0 0
        %1273 = vmatprep.subr.bf16.mxu0 0
        %1274 = vmatpush1.bf16.xpose.msra.mxu0 0
        %1275 = vmatprep.subr.bf16.mxu0 0
        %1276 = vmatpush1.bf16.xpose.msra.mxu0 0
        %1277 = vmatprep.subr.bf16.mxu0 0
        %1278 = vmatpush1.bf16.xpose.msra.mxu0 0
        %1279 = vmatprep.subr.bf16.mxu0 0
        %1280 = vmatpush1.bf16.xpose.msra.mxu0 0
        %1281 = vmatprep.subr.bf16.mxu0 0
        %1282 = vmatpush1.bf16.xpose.msra.mxu0 0
        %1283 = vmatprep.subr.bf16.mxu0 0
        %1284 = vmatpush1.bf16.xpose.msra.mxu0 0
        %1285 = vmatprep.subr.bf16.mxu0 0
        %1286 = vmatpush1.bf16.xpose.msra.mxu0 %v1269
        %1287 = vmatprep.subr.bf16.mxu0 0
        %1288 = vmatpush2.bf16.xpose.msra.mxu0 0
        %1289 = vmatprep.subr.bf16.mxu0 0
        %1290 = vmatpush2.bf16.xpose.msra.mxu0 0
        %1291 = vmatprep.subr.bf16.mxu0 0
        %1292 = vmatpush2.bf16.xpose.msra.mxu0 0
        %1293 = vmatprep.subr.bf16.mxu0 0
        %1294 = vmatpush2.bf16.xpose.msra.mxu0 0
        %1295 = vmatprep.subr.bf16.mxu0 0
        %1296 = vmatpush2.bf16.xpose.msra.mxu0 0
        %1297 = vmatprep.subr.bf16.mxu0 0
        %1298 = vmatpush2.bf16.xpose.msra.mxu0 0
        %1299 = vmatprep.subr.bf16.mxu0 0
        %1300 = vmatpush2.bf16.xpose.msra.mxu0 0
        %1301 = vmatprep.subr.bf16.mxu0 0
        %1302 = vmatpush2.bf16.xpose.msra.mxu0 0
        %1303 = vmatprep.mubr.bf16.mxu0 0
        %1304 = vmatmul.mubr.bf16.gmra.mxu0 %v1266
        %v1305 = vpop.f32.mrf.mxu0
        %v1306 = vadd.f32 %v792, %v1305
        %v1307 = vpop.f32.mrf.mxu0
        %v1308 = vpop.f32.mrf.mxu0
        %v1309 = vpop.f32.mrf.mxu0
        %1310 = vdwg.mxu0
        %1311 = vrot.lane.b32.xlu0 %v780, 112
        %v1312 = vpop.permute.xlu0 %1311
        %1313 = vrot.lane.b32.xlu0 %v849, 80
        %v1314 = vpop.permute.xlu0 %1313
        %v1316 = vsel %vm802, %v1312, 0
        %v1319 = vsel %vm802, %v1314, 0
        %1321 = vmatprep.subr.bf16.mxu0 0
        %1322 = vmatpush1.bf16.xpose.msra.mxu0 0
        %1323 = vmatprep.subr.bf16.mxu0 0
        %1324 = vmatpush1.bf16.xpose.msra.mxu0 0
        %1325 = vmatprep.subr.bf16.mxu0 0
        %1326 = vmatpush1.bf16.xpose.msra.mxu0 0
        %1327 = vmatprep.subr.bf16.mxu0 0
        %1328 = vmatpush1.bf16.xpose.msra.mxu0 0
        %1329 = vmatprep.subr.bf16.mxu0 0
        %1330 = vmatpush1.bf16.xpose.msra.mxu0 0
        %1331 = vmatprep.subr.bf16.mxu0 0
        %1332 = vmatpush1.bf16.xpose.msra.mxu0 0
        %1333 = vmatprep.subr.bf16.mxu0 0
        %1334 = vmatpush1.bf16.xpose.msra.mxu0 0
        %1335 = vmatprep.subr.bf16.mxu0 0
        %1336 = vmatpush1.bf16.xpose.msra.mxu0 %v1319
        %1337 = vmatprep.subr.bf16.mxu0 0
        %1338 = vmatpush2.bf16.xpose.msra.mxu0 0
        %1339 = vmatprep.subr.bf16.mxu0 0
        %1340 = vmatpush2.bf16.xpose.msra.mxu0 0
        %1341 = vmatprep.subr.bf16.mxu0 0
        %1342 = vmatpush2.bf16.xpose.msra.mxu0 0
        %1343 = vmatprep.subr.bf16.mxu0 0
        %1344 = vmatpush2.bf16.xpose.msra.mxu0 0
        %1345 = vmatprep.subr.bf16.mxu0 0
        %1346 = vmatpush2.bf16.xpose.msra.mxu0 0
        %1347 = vmatprep.subr.bf16.mxu0 0
        %1348 = vmatpush2.bf16.xpose.msra.mxu0 0
        %1349 = vmatprep.subr.bf16.mxu0 0
        %1350 = vmatpush2.bf16.xpose.msra.mxu0 0
        %1351 = vmatprep.subr.bf16.mxu0 0
        %1352 = vmatpush2.bf16.xpose.msra.mxu0 0
        %1353 = vmatprep.mubr.bf16.mxu0 0
        %1354 = vmatmul.mubr.bf16.gmra.mxu0 %v1316
        %v1355 = vpop.f32.mrf.mxu0
        %v1356 = vadd.f32 %v796, %v1355
        %v1357 = vpop.f32.mrf.mxu0
        %v1358 = vpop.f32.mrf.mxu0
        %v1359 = vpop.f32.mrf.mxu0
        %1360 = vdwg.mxu0
        %v1361 = vsel %vm802, %v1306, -inf
        %1362 = vmax.xlane.f32.xlu0 %v1361
        %v1363 = vpop.xlane.xlu0 %1362
        %v1364 = vsel %vm802, %v1356, -inf
        %1365 = vmax.xlane.f32.xlu0 %v1364
        %v1366 = vpop.xlane.xlu0 %1365
        %v1367 = vsub.f32 %v1306, %v1363
        %v1368 = vsub.f32 %v1356, %v1366
        %v1369 = vmul.f32 %v1367, 1.442695
        %v1370 = vpow.pop %v1369
        %v1371 = vmul.f32 %v1368, 1.442695
        %v1372 = vpow.pop %v1371
        %v1373 = vsel %vm802, %v1370, 0.0
        %1374 = vadd.xlane.f32.xlu0 %v1373
        %v1375 = vpop.xlane.xlu0 %1374
        %v1376 = vsel %vm802, %v1372, 0.0
        %1377 = vadd.xlane.f32.xlu0 %v1376
        %v1378 = vpop.xlane.xlu0 %1377
        %v1379 = vrcp.pop %v1375
        %v1380 = vrcp.pop %v1378
        %v1381 = vmul.f32 %v1370, %v1379
        %v1382 = vmul.f32 %v1372, %v1380
        %v1383 = vpack.c.bf16 %v1381, %v1381
        %v1384 = vpack.c.bf16 %v1382, %v1382
        %1385 = vrot.lane.b32.xlu0 %v799, 48
        %v1386 = vpop.permute.xlu0 %1385
        %v1388 = vsel %vm802, %v1383, 0
        %v1391 = vsel %vm927, %v1386, 0
        %1393 = vmatprep.subr.bf16.mxu0 0
        %1394 = vmatpush1.bf16.msra.mxu0 0
        %1395 = vmatprep.subr.bf16.mxu0 0
        %1396 = vmatpush1.bf16.msra.mxu0 0
        %1397 = vmatprep.subr.bf16.mxu0 0
        %1398 = vmatpush1.bf16.msra.mxu0 0
        %1399 = vmatprep.subr.bf16.mxu0 0
        %1400 = vmatpush1.bf16.msra.mxu0 0
        %1401 = vmatprep.subr.bf16.mxu0 0
        %1402 = vmatpush1.bf16.msra.mxu0 0
        %1403 = vmatprep.subr.bf16.mxu0 0
        %1404 = vmatpush1.bf16.msra.mxu0 0
        %1405 = vmatprep.subr.bf16.mxu0 0
        %1406 = vmatpush1.bf16.msra.mxu0 0
        %1407 = vmatprep.subr.bf16.mxu0 0
        %1408 = vmatpush1.bf16.msra.mxu0 %v1391
        %1409 = vmatprep.subr.bf16.mxu0 0
        %1410 = vmatpush2.bf16.msra.mxu0 0
        %1411 = vmatprep.subr.bf16.mxu0 0
        %1412 = vmatpush2.bf16.msra.mxu0 0
        %1413 = vmatprep.subr.bf16.mxu0 0
        %1414 = vmatpush2.bf16.msra.mxu0 0
        %1415 = vmatprep.subr.bf16.mxu0 0
        %1416 = vmatpush2.bf16.msra.mxu0 0
        %1417 = vmatprep.subr.bf16.mxu0 0
        %1418 = vmatpush2.bf16.msra.mxu0 0
        %1419 = vmatprep.subr.bf16.mxu0 0
        %1420 = vmatpush2.bf16.msra.mxu0 0
        %1421 = vmatprep.subr.bf16.mxu0 0
        %1422 = vmatpush2.bf16.msra.mxu0 0
        %1423 = vmatprep.subr.bf16.mxu0 0
        %1424 = vmatpush2.bf16.msra.mxu0 0
        %1425 = vmatprep.mubr.bf16.mxu0 0
        %1426 = vmatmul.mubr.bf16.gmra.mxu0 %v1388
        %v1427 = vpop.f32.mrf.mxu0
        %v1428 = vadd.f32 0.0, %v1427
        %v1429 = vpop.f32.mrf.mxu0
        %v1430 = vpop.f32.mrf.mxu0
        %v1431 = vpop.f32.mrf.mxu0
        %1432 = vdwg.mxu0
        %1433 = vrot.lane.b32.xlu0 %v849, 48
        %v1434 = vpop.permute.xlu0 %1433
        %v1436 = vsel %vm802, %v1384, 0
        %v1439 = vsel %vm927, %v1434, 0
        %1441 = vmatprep.subr.bf16.mxu0 0
        %1442 = vmatpush1.bf16.msra.mxu0 0
        %1443 = vmatprep.subr.bf16.mxu0 0
        %1444 = vmatpush1.bf16.msra.mxu0 0
        %1445 = vmatprep.subr.bf16.mxu0 0
        %1446 = vmatpush1.bf16.msra.mxu0 0
        %1447 = vmatprep.subr.bf16.mxu0 0
        %1448 = vmatpush1.bf16.msra.mxu0 0
        %1449 = vmatprep.subr.bf16.mxu0 0
        %1450 = vmatpush1.bf16.msra.mxu0 0
        %1451 = vmatprep.subr.bf16.mxu0 0
        %1452 = vmatpush1.bf16.msra.mxu0 0
        %1453 = vmatprep.subr.bf16.mxu0 0
        %1454 = vmatpush1.bf16.msra.mxu0 0
        %1455 = vmatprep.subr.bf16.mxu0 0
        %1456 = vmatpush1.bf16.msra.mxu0 %v1439
        %1457 = vmatprep.subr.bf16.mxu0 0
        %1458 = vmatpush2.bf16.msra.mxu0 0
        %1459 = vmatprep.subr.bf16.mxu0 0
        %1460 = vmatpush2.bf16.msra.mxu0 0
        %1461 = vmatprep.subr.bf16.mxu0 0
        %1462 = vmatpush2.bf16.msra.mxu0 0
        %1463 = vmatprep.subr.bf16.mxu0 0
        %1464 = vmatpush2.bf16.msra.mxu0 0
        %1465 = vmatprep.subr.bf16.mxu0 0
        %1466 = vmatpush2.bf16.msra.mxu0 0
        %1467 = vmatprep.subr.bf16.mxu0 0
        %1468 = vmatpush2.bf16.msra.mxu0 0
        %1469 = vmatprep.subr.bf16.mxu0 0
        %1470 = vmatpush2.bf16.msra.mxu0 0
        %1471 = vmatprep.subr.bf16.mxu0 0
        %1472 = vmatpush2.bf16.msra.mxu0 0
        %1473 = vmatprep.mubr.bf16.mxu0 0
        %1474 = vmatmul.mubr.bf16.gmra.mxu0 %v1436
        %v1475 = vpop.f32.mrf.mxu0
        %v1476 = vadd.f32 0.0, %v1475
        %v1477 = vpop.f32.mrf.mxu0
        %v1478 = vpop.f32.mrf.mxu0
        %v1479 = vpop.f32.mrf.mxu0
        %1480 = vdwg.mxu0
        %v1481 = vpack.c.bf16 %v1428, %v1428
        %v1482 = vpack.c.bf16 %v1476, %v1476
        %v1485 = vunpack.c.l.b16 %v1481
        %v1486 = vunpack.c.l.b16 %v1482
        %v1487 = vpack.c.b16 %v1485, %v1485
        %v1488 = vpack.c.b16 %v1486, %v1486
        %1489 = vrot.lane.b32.xlu0 %v1487, 16
        %v1490 = vpop.permute.xlu0 %1489
        %1491 = vrot.lane.b32.xlu0 %v1488, 16
        %v1492 = vpop.permute.xlu0 %1491
        %vm1495 = vcmask 191616
        %1496 = vst.msk [vmem:[#allocation2] sm:$0xf] %vm1495, %v1490
        %1497 = vst.msk [vmem:[#allocation2 + $0x4] sm:$0xf] %vm1495, %v1492
        %1498 = vrot.lane.b32.xlu0 %v779, 104
        %v1499 = vpop.permute.xlu0 %1498
        %1500 = vrot.lane.b32.xlu0 %v799, 72
        %v1501 = vpop.permute.xlu0 %1500
        %v1503 = vsel %vm802, %v1499, 0
        %v1506 = vsel %vm802, %v1501, 0
        %1508 = vmatprep.subr.bf16.mxu0 0
        %1509 = vmatpush1.bf16.xpose.msra.mxu0 0
        %1510 = vmatprep.subr.bf16.mxu0 0
        %1511 = vmatpush1.bf16.xpose.msra.mxu0 0
        %1512 = vmatprep.subr.bf16.mxu0 0
        %1513 = vmatpush1.bf16.xpose.msra.mxu0 0
        %1514 = vmatprep.subr.bf16.mxu0 0
        %1515 = vmatpush1.bf16.xpose.msra.mxu0 0
        %1516 = vmatprep.subr.bf16.mxu0 0
        %1517 = vmatpush1.bf16.xpose.msra.mxu0 0
        %1518 = vmatprep.subr.bf16.mxu0 0
        %1519 = vmatpush1.bf16.xpose.msra.mxu0 0
        %1520 = vmatprep.subr.bf16.mxu0 0
        %1521 = vmatpush1.bf16.xpose.msra.mxu0 0
        %1522 = vmatprep.subr.bf16.mxu0 0
        %1523 = vmatpush1.bf16.xpose.msra.mxu0 %v1506
        %1524 = vmatprep.subr.bf16.mxu0 0
        %1525 = vmatpush2.bf16.xpose.msra.mxu0 0
        %1526 = vmatprep.subr.bf16.mxu0 0
        %1527 = vmatpush2.bf16.xpose.msra.mxu0 0
        %1528 = vmatprep.subr.bf16.mxu0 0
        %1529 = vmatpush2.bf16.xpose.msra.mxu0 0
        %1530 = vmatprep.subr.bf16.mxu0 0
        %1531 = vmatpush2.bf16.xpose.msra.mxu0 0
        %1532 = vmatprep.subr.bf16.mxu0 0
        %1533 = vmatpush2.bf16.xpose.msra.mxu0 0
        %1534 = vmatprep.subr.bf16.mxu0 0
        %1535 = vmatpush2.bf16.xpose.msra.mxu0 0
        %1536 = vmatprep.subr.bf16.mxu0 0
        %1537 = vmatpush2.bf16.xpose.msra.mxu0 0
        %1538 = vmatprep.subr.bf16.mxu0 0
        %1539 = vmatpush2.bf16.xpose.msra.mxu0 0
        %1540 = vmatprep.mubr.bf16.mxu0 0
        %1541 = vmatmul.mubr.bf16.gmra.mxu0 %v1503
        %v1542 = vpop.f32.mrf.mxu0
        %v1543 = vadd.f32 %v792, %v1542
        %v1544 = vpop.f32.mrf.mxu0
        %v1545 = vpop.f32.mrf.mxu0
        %v1546 = vpop.f32.mrf.mxu0
        %1547 = vdwg.mxu0
        %1548 = vrot.lane.b32.xlu0 %v780, 104
        %v1549 = vpop.permute.xlu0 %1548
        %1550 = vrot.lane.b32.xlu0 %v849, 72
        %v1551 = vpop.permute.xlu0 %1550
        %v1553 = vsel %vm802, %v1549, 0
        %v1556 = vsel %vm802, %v1551, 0
        %1558 = vmatprep.subr.bf16.mxu0 0
        %1559 = vmatpush1.bf16.xpose.msra.mxu0 0
        %1560 = vmatprep.subr.bf16.mxu0 0
        %1561 = vmatpush1.bf16.xpose.msra.mxu0 0
        %1562 = vmatprep.subr.bf16.mxu0 0
        %1563 = vmatpush1.bf16.xpose.msra.mxu0 0
        %1564 = vmatprep.subr.bf16.mxu0 0
        %1565 = vmatpush1.bf16.xpose.msra.mxu0 0
        %1566 = vmatprep.subr.bf16.mxu0 0
        %1567 = vmatpush1.bf16.xpose.msra.mxu0 0
        %1568 = vmatprep.subr.bf16.mxu0 0
        %1569 = vmatpush1.bf16.xpose.msra.mxu0 0
        %1570 = vmatprep.subr.bf16.mxu0 0
        %1571 = vmatpush1.bf16.xpose.msra.mxu0 0
        %1572 = vmatprep.subr.bf16.mxu0 0
        %1573 = vmatpush1.bf16.xpose.msra.mxu0 %v1556
        %1574 = vmatprep.subr.bf16.mxu0 0
        %1575 = vmatpush2.bf16.xpose.msra.mxu0 0
        %1576 = vmatprep.subr.bf16.mxu0 0
        %1577 = vmatpush2.bf16.xpose.msra.mxu0 0
        %1578 = vmatprep.subr.bf16.mxu0 0
        %1579 = vmatpush2.bf16.xpose.msra.mxu0 0
        %1580 = vmatprep.subr.bf16.mxu0 0
        %1581 = vmatpush2.bf16.xpose.msra.mxu0 0
        %1582 = vmatprep.subr.bf16.mxu0 0
        %1583 = vmatpush2.bf16.xpose.msra.mxu0 0
        %1584 = vmatprep.subr.bf16.mxu0 0
        %1585 = vmatpush2.bf16.xpose.msra.mxu0 0
        %1586 = vmatprep.subr.bf16.mxu0 0
        %1587 = vmatpush2.bf16.xpose.msra.mxu0 0
        %1588 = vmatprep.subr.bf16.mxu0 0
        %1589 = vmatpush2.bf16.xpose.msra.mxu0 0
        %1590 = vmatprep.mubr.bf16.mxu0 0
        %1591 = vmatmul.mubr.bf16.gmra.mxu0 %v1553
        %v1592 = vpop.f32.mrf.mxu0
        %v1593 = vadd.f32 %v796, %v1592
        %v1594 = vpop.f32.mrf.mxu0
        %v1595 = vpop.f32.mrf.mxu0
        %v1596 = vpop.f32.mrf.mxu0
        %1597 = vdwg.mxu0
        %v1598 = vsel %vm802, %v1543, -inf
        %1599 = vmax.xlane.f32.xlu0 %v1598
        %v1600 = vpop.xlane.xlu0 %1599
        %v1601 = vsel %vm802, %v1593, -inf
        %1602 = vmax.xlane.f32.xlu0 %v1601
        %v1603 = vpop.xlane.xlu0 %1602
        %v1604 = vsub.f32 %v1543, %v1600
        %v1605 = vsub.f32 %v1593, %v1603
        %v1606 = vmul.f32 %v1604, 1.442695
        %v1607 = vpow.pop %v1606
        %v1608 = vmul.f32 %v1605, 1.442695
        %v1609 = vpow.pop %v1608
        %v1610 = vsel %vm802, %v1607, 0.0
        %1611 = vadd.xlane.f32.xlu0 %v1610
        %v1612 = vpop.xlane.xlu0 %1611
        %v1613 = vsel %vm802, %v1609, 0.0
        %1614 = vadd.xlane.f32.xlu0 %v1613
        %v1615 = vpop.xlane.xlu0 %1614
        %v1616 = vrcp.pop %v1612
        %v1617 = vrcp.pop %v1615
        %v1618 = vmul.f32 %v1607, %v1616
        %v1619 = vmul.f32 %v1609, %v1617
        %v1620 = vpack.c.bf16 %v1618, %v1618
        %v1621 = vpack.c.bf16 %v1619, %v1619
        %1622 = vrot.lane.b32.xlu0 %v799, 40
        %v1623 = vpop.permute.xlu0 %1622
        %v1625 = vsel %vm802, %v1620, 0
        %v1628 = vsel %vm927, %v1623, 0
        %1630 = vmatprep.subr.bf16.mxu0 0
        %1631 = vmatpush1.bf16.msra.mxu0 0
        %1632 = vmatprep.subr.bf16.mxu0 0
        %1633 = vmatpush1.bf16.msra.mxu0 0
        %1634 = vmatprep.subr.bf16.mxu0 0
        %1635 = vmatpush1.bf16.msra.mxu0 0
        %1636 = vmatprep.subr.bf16.mxu0 0
        %1637 = vmatpush1.bf16.msra.mxu0 0
        %1638 = vmatprep.subr.bf16.mxu0 0
        %1639 = vmatpush1.bf16.msra.mxu0 0
        %1640 = vmatprep.subr.bf16.mxu0 0
        %1641 = vmatpush1.bf16.msra.mxu0 0
        %1642 = vmatprep.subr.bf16.mxu0 0
        %1643 = vmatpush1.bf16.msra.mxu0 0
        %1644 = vmatprep.subr.bf16.mxu0 0
        %1645 = vmatpush1.bf16.msra.mxu0 %v1628
        %1646 = vmatprep.subr.bf16.mxu0 0
        %1647 = vmatpush2.bf16.msra.mxu0 0
        %1648 = vmatprep.subr.bf16.mxu0 0
        %1649 = vmatpush2.bf16.msra.mxu0 0
        %1650 = vmatprep.subr.bf16.mxu0 0
        %1651 = vmatpush2.bf16.msra.mxu0 0
        %1652 = vmatprep.subr.bf16.mxu0 0
        %1653 = vmatpush2.bf16.msra.mxu0 0
        %1654 = vmatprep.subr.bf16.mxu0 0
        %1655 = vmatpush2.bf16.msra.mxu0 0
        %1656 = vmatprep.subr.bf16.mxu0 0
        %1657 = vmatpush2.bf16.msra.mxu0 0
        %1658 = vmatprep.subr.bf16.mxu0 0
        %1659 = vmatpush2.bf16.msra.mxu0 0
        %1660 = vmatprep.subr.bf16.mxu0 0
        %1661 = vmatpush2.bf16.msra.mxu0 0
        %1662 = vmatprep.mubr.bf16.mxu0 0
        %1663 = vmatmul.mubr.bf16.gmra.mxu0 %v1625
        %v1664 = vpop.f32.mrf.mxu0
        %v1665 = vadd.f32 0.0, %v1664
        %v1666 = vpop.f32.mrf.mxu0
        %v1667 = vpop.f32.mrf.mxu0
        %v1668 = vpop.f32.mrf.mxu0
        %1669 = vdwg.mxu0
        %1670 = vrot.lane.b32.xlu0 %v849, 40
        %v1671 = vpop.permute.xlu0 %1670
        %v1673 = vsel %vm802, %v1621, 0
        %v1676 = vsel %vm927, %v1671, 0
        %1678 = vmatprep.subr.bf16.mxu0 0
        %1679 = vmatpush1.bf16.msra.mxu0 0
        %1680 = vmatprep.subr.bf16.mxu0 0
        %1681 = vmatpush1.bf16.msra.mxu0 0
        %1682 = vmatprep.subr.bf16.mxu0 0
        %1683 = vmatpush1.bf16.msra.mxu0 0
        %1684 = vmatprep.subr.bf16.mxu0 0
        %1685 = vmatpush1.bf16.msra.mxu0 0
        %1686 = vmatprep.subr.bf16.mxu0 0
        %1687 = vmatpush1.bf16.msra.mxu0 0
        %1688 = vmatprep.subr.bf16.mxu0 0
        %1689 = vmatpush1.bf16.msra.mxu0 0
        %1690 = vmatprep.subr.bf16.mxu0 0
        %1691 = vmatpush1.bf16.msra.mxu0 0
        %1692 = vmatprep.subr.bf16.mxu0 0
        %1693 = vmatpush1.bf16.msra.mxu0 %v1676
        %1694 = vmatprep.subr.bf16.mxu0 0
        %1695 = vmatpush2.bf16.msra.mxu0 0
        %1696 = vmatprep.subr.bf16.mxu0 0
        %1697 = vmatpush2.bf16.msra.mxu0 0
        %1698 = vmatprep.subr.bf16.mxu0 0
        %1699 = vmatpush2.bf16.msra.mxu0 0
        %1700 = vmatprep.subr.bf16.mxu0 0
        %1701 = vmatpush2.bf16.msra.mxu0 0
        %1702 = vmatprep.subr.bf16.mxu0 0
        %1703 = vmatpush2.bf16.msra.mxu0 0
        %1704 = vmatprep.subr.bf16.mxu0 0
        %1705 = vmatpush2.bf16.msra.mxu0 0
        %1706 = vmatprep.subr.bf16.mxu0 0
        %1707 = vmatpush2.bf16.msra.mxu0 0
        %1708 = vmatprep.subr.bf16.mxu0 0
        %1709 = vmatpush2.bf16.msra.mxu0 0
        %1710 = vmatprep.mubr.bf16.mxu0 0
        %1711 = vmatmul.mubr.bf16.gmra.mxu0 %v1673
        %v1712 = vpop.f32.mrf.mxu0
        %v1713 = vadd.f32 0.0, %v1712
        %v1714 = vpop.f32.mrf.mxu0
        %v1715 = vpop.f32.mrf.mxu0
        %v1716 = vpop.f32.mrf.mxu0
        %1717 = vdwg.mxu0
        %v1718 = vpack.c.bf16 %v1665, %v1665
        %v1719 = vpack.c.bf16 %v1713, %v1713
        %v1722 = vunpack.c.l.b16 %v1718
        %v1723 = vunpack.c.l.b16 %v1719
        %v1724 = vpack.c.b16 %v1722, %v1722
        %v1725 = vpack.c.b16 %v1723, %v1723
        %1726 = vrot.lane.b32.xlu0 %v1724, 24
        %v1727 = vpop.permute.xlu0 %1726
        %1728 = vrot.lane.b32.xlu0 %v1725, 24
        %v1729 = vpop.permute.xlu0 %1728
        %vm1732 = vcmask 257216
        %1733 = vst.msk [vmem:[#allocation2] sm:$0xf] %vm1732, %v1727
        %1734 = vst.msk [vmem:[#allocation2 + $0x4] sm:$0xf] %vm1732, %v1729
        %v1735 = vld [vmem:[#allocation2] sm:$0xf]
        %v1736 = vld [vmem:[#allocation2 + $0x4] sm:$0xf]
        %v1737 = vld [vmem:[%s659] sm:$0xf]
        %v1738 = vld [vmem:[%s659 + $0x4] sm:$0xf]
        %v1739 = vld [vmem:[%s659 + $0x8] sm:$0xf]
        %v1740 = vld [vmem:[%s659 + $0xc] sm:$0xf]
        %v1741 = vld [vmem:[%s662] sm:$0x1]
        %v1743 = vlaneseq
        %v1744 = vshrl.u32 %v1743, 7
        %v1745 = vsub.s32 0, %v1744
        %v1746 = vrot.slane %v1741, %v1745
        %v1750 = vunpack.c.l.b16 %v1735
        %v1751 = vunpack.c.l.b16 %v1736
        %v1752 = vpack.c.b16 %v1751, %v1750
        %v1757 = vunpack.c.l.b16 %v1737
        %v1758 = vunpack.c.l.b16 %v1738
        %v1759 = vunpack.c.l.b16 %v1739
        %v1760 = vunpack.c.l.b16 %v1740
        %v1761 = vpack.c.b16 %v1758, %v1757
        %v1762 = vpack.c.b16 %v1760, %v1759
        %v1766 = vsel %vm728, %v1752, 0
        %1768 = vmatprep.subr.bf16.mxu0 0
        %1769 = vmatpush1.bf16.msra.mxu0 0
        %1770 = vmatprep.subr.bf16.mxu0 0
        %1771 = vmatpush1.bf16.msra.mxu0 0
        %1772 = vmatprep.subr.bf16.mxu0 0
        %1773 = vmatpush1.bf16.msra.mxu0 0
        %1774 = vmatprep.subr.bf16.mxu0 0
        %1775 = vmatpush1.bf16.msra.mxu0 0
        %1776 = vmatprep.subr.bf16.mxu0 0
        %1777 = vmatpush1.bf16.msra.mxu0 0
        %1778 = vmatprep.subr.bf16.mxu0 0
        %1779 = vmatpush1.bf16.msra.mxu0 0
        %1780 = vmatprep.subr.bf16.mxu0 0
        %1781 = vmatpush1.bf16.msra.mxu0 %v1762
        %1782 = vmatprep.subr.bf16.mxu0 0
        %1783 = vmatpush1.bf16.msra.mxu0 %v1761
        %1784 = vmatprep.subr.bf16.mxu0 0
        %1785 = vmatpush2.bf16.msra.mxu0 0
        %1786 = vmatprep.subr.bf16.mxu0 0
        %1787 = vmatpush2.bf16.msra.mxu0 0
        %1788 = vmatprep.subr.bf16.mxu0 0
        %1789 = vmatpush2.bf16.msra.mxu0 0
        %1790 = vmatprep.subr.bf16.mxu0 0
        %1791 = vmatpush2.bf16.msra.mxu0 0
        %1792 = vmatprep.subr.bf16.mxu0 0
        %1793 = vmatpush2.bf16.msra.mxu0 0
        %1794 = vmatprep.subr.bf16.mxu0 0
        %1795 = vmatpush2.bf16.msra.mxu0 0
        %1796 = vmatprep.subr.bf16.mxu0 0
        %1797 = vmatpush2.bf16.msra.mxu0 0
        %1798 = vmatprep.subr.bf16.mxu0 0
        %1799 = vmatpush2.bf16.msra.mxu0 0
        %1800 = vmatprep.mubr.bf16.mxu0 0
        %1801 = vmatmul.mubr.bf16.gmra.mxu0 %v1766
        %v1802 = vpop.f32.mrf.mxu0
        %v1803 = vadd.f32 %v1746, %v1802
        %v1804 = vpop.f32.mrf.mxu0
        %v1805 = vpop.f32.mrf.mxu0
        %v1806 = vadd.f32 %v1746, %v1805
        %v1807 = vpop.f32.mrf.mxu0
        %1808 = vdwg.mxu0
        %v1809 = vadd.f32 %v1803, %v702
        %v1810 = vadd.f32 %v1806, %v703
        %v1811 = vld [vmem:[%s665] sm:$0x1]
        %v1812 = vld [vmem:[%s668] sm:$0x1]
        %v1813 = vsel %vm728, %v1809, 0.0
        %1814 = vadd.xlane.f32.xlu0 %v1813
        %v1815 = vpop.xlane.xlu0 %1814
        %v1816 = vsel %vm728, %v1810, 0.0
        %1817 = vadd.xlane.f32.xlu0 %v1816
        %v1818 = vpop.xlane.xlu0 %1817
        %v1819 = vrcp.pop 32.0
        %v1820 = vmul.f32 %v1815, %v1819
        %v1821 = vmul.f32 %v1818, %v1819
        %v1822 = vsub.f32 %v1809, %v1820
        %v1823 = vsub.f32 %v1810, %v1821
        %v1824 = vmul.f32 %v1822, %v1822
        %v1825 = vmul.f32 %v1823, %v1823
        %v1826 = vsel %vm728, %v1824, 0.0
        %1827 = vadd.xlane.f32.xlu0 %v1826
        %v1828 = vpop.xlane.xlu0 %1827
        %v1829 = vsel %vm728, %v1825, 0.0
        %1830 = vadd.xlane.f32.xlu0 %v1829
        %v1831 = vpop.xlane.xlu0 %1830
        %v1832 = vmul.f32 %v1828, %v1819
        %v1833 = vmul.f32 %v1831, %v1819
        %v1834 = vadd.f32 %v1832, 1e-12
        %v1835 = vadd.f32 %v1833, 1e-12
        %v1836 = vrsqrt.pop %v1834
        %v1837 = vrsqrt.pop %v1835
        %v1838 = vmul.f32 %v1822, %v1836
        %v1839 = vmul.f32 %v1823, %v1837
        %v1841 = vlaneseq
        %v1842 = vshrl.u32 %v1841, 7
        %v1843 = vsub.s32 0, %v1842
        %v1844 = vrot.slane %v1811, %v1843
        %v1846 = vmul.f32 %v1838, %v1844
        %v1847 = vmul.f32 %v1839, %v1844
        %v1849 = vlaneseq
        %v1850 = vshrl.u32 %v1849, 7
        %v1851 = vsub.s32 0, %v1850
        %v1852 = vrot.slane %v1812, %v1851
        %v1854 = vadd.f32 %v1846, %v1852
        %v1855 = vadd.f32 %v1847, %v1852
        %v1856 = vpack.c.bf16 %v1855, %v1854
        %v1857 = vld [vmem:[%s673] sm:$0xf]
        %v1858 = vld [vmem:[%s673 + $0x4] sm:$0xf]
        %v1859 = vld [vmem:[%s673 + $0x8] sm:$0xf]
        %v1860 = vld [vmem:[%s673 + $0xc] sm:$0xf]
        %v1861 = vld [vmem:[%s676] sm:$0x1]
        %v1863 = vlaneseq
        %v1864 = vshrl.u32 %v1863, 7
        %v1865 = vsub.s32 0, %v1864
        %v1866 = vrot.slane %v1861, %v1865
        %v1872 = vunpack.c.l.b16 %v1857
        %v1873 = vunpack.c.l.b16 %v1858
        %v1874 = vunpack.c.l.b16 %v1859
        %v1875 = vunpack.c.l.b16 %v1860
        %v1876 = vpack.c.b16 %v1873, %v1872
        %v1877 = vpack.c.b16 %v1875, %v1874
        %v1881 = vsel %vm728, %v1856, 0
        %1883 = vmatprep.subr.bf16.mxu0 0
        %1884 = vmatpush1.bf16.msra.mxu0 0
        %1885 = vmatprep.subr.bf16.mxu0 0
        %1886 = vmatpush1.bf16.msra.mxu0 0
        %1887 = vmatprep.subr.bf16.mxu0 0
        %1888 = vmatpush1.bf16.msra.mxu0 0
        %1889 = vmatprep.subr.bf16.mxu0 0
        %1890 = vmatpush1.bf16.msra.mxu0 0
        %1891 = vmatprep.subr.bf16.mxu0 0
        %1892 = vmatpush1.bf16.msra.mxu0 0
        %1893 = vmatprep.subr.bf16.mxu0 0
        %1894 = vmatpush1.bf16.msra.mxu0 0
        %1895 = vmatprep.subr.bf16.mxu0 0
        %1896 = vmatpush1.bf16.msra.mxu0 %v1877
        %1897 = vmatprep.subr.bf16.mxu0 0
        %1898 = vmatpush1.bf16.msra.mxu0 %v1876
        %1899 = vmatprep.subr.bf16.mxu0 0
        %1900 = vmatpush2.bf16.msra.mxu0 0
        %1901 = vmatprep.subr.bf16.mxu0 0
        %1902 = vmatpush2.bf16.msra.mxu0 0
        %1903 = vmatprep.subr.bf16.mxu0 0
        %1904 = vmatpush2.bf16.msra.mxu0 0
        %1905 = vmatprep.subr.bf16.mxu0 0
        %1906 = vmatpush2.bf16.msra.mxu0 0
        %1907 = vmatprep.subr.bf16.mxu0 0
        %1908 = vmatpush2.bf16.msra.mxu0 0
        %1909 = vmatprep.subr.bf16.mxu0 0
        %1910 = vmatpush2.bf16.msra.mxu0 0
        %1911 = vmatprep.subr.bf16.mxu0 0
        %1912 = vmatpush2.bf16.msra.mxu0 0
        %1913 = vmatprep.subr.bf16.mxu0 0
        %1914 = vmatpush2.bf16.msra.mxu0 0
        %1915 = vmatprep.mubr.bf16.mxu0 0
        %1916 = vmatmul.mubr.bf16.gmra.mxu0 %v1881
        %v1917 = vpop.f32.mrf.mxu0
        %v1918 = vadd.f32 %v1866, %v1917
        %v1919 = vpop.f32.mrf.mxu0
        %v1920 = vpop.f32.mrf.mxu0
        %v1921 = vadd.f32 %v1866, %v1920
        %v1922 = vpop.f32.mrf.mxu0
        %1923 = vdwg.mxu0
        %v1924 = vmul.f32 %v1918, 0.5
        %v1925 = vmul.f32 %v1921, 0.5
        %v1926 = vmul.f32 %v1918, 0.044715
        %v1927 = vmul.f32 %v1921, 0.044715
        %v1928 = vmul.f32 %v1926, %v1918
        %v1929 = vmul.f32 %v1927, %v1921
        %v1930 = vmul.f32 %v1928, %v1918
        %v1931 = vmul.f32 %v1929, %v1921
        %v1932 = vadd.f32 %v1918, %v1930
        %v1933 = vadd.f32 %v1921, %v1931
        %v1934 = vmul.f32 %v1932, 0.7978846
        %v1935 = vmul.f32 %v1933, 0.7978846
        %v1936 = vtanh.pop %v1934
        %v1937 = vtanh.pop %v1935
        %v1938 = vadd.f32 %v1936, 1.0
        %v1939 = vadd.f32 %v1937, 1.0
        %v1940 = vmul.f32 %v1924, %v1938
        %v1941 = vmul.f32 %v1925, %v1939
        %v1942 = vpack.c.bf16 %v1941, %v1940
        %v1943 = vld [vmem:[%s681] sm:$0xf]
        %v1944 = vld [vmem:[%s681 + $0x4] sm:$0xf]
        %v1945 = vld [vmem:[%s681 + $0x8] sm:$0xf]
        %v1946 = vld [vmem:[%s681 + $0xc] sm:$0xf]
        %v1947 = vld [vmem:[%s681 + $0x10] sm:$0xf]
        %v1948 = vld [vmem:[%s681 + $0x14] sm:$0xf]
        %v1949 = vld [vmem:[%s681 + $0x18] sm:$0xf]
        %v1950 = vld [vmem:[%s681 + $0x1c] sm:$0xf]
        %v1951 = vld [vmem:[%s684] sm:$0x1]
        %v1953 = vlaneseq
        %v1954 = vshrl.u32 %v1953, 7
        %v1955 = vsub.s32 0, %v1954
        %v1956 = vrot.slane %v1951, %v1955
        %v1966 = vunpack.c.l.b16 %v1943
        %v1967 = vunpack.c.l.b16 %v1944
        %v1968 = vunpack.c.l.b16 %v1945
        %v1969 = vunpack.c.l.b16 %v1946
        %v1970 = vunpack.c.l.b16 %v1947
        %v1971 = vunpack.c.l.b16 %v1948
        %v1972 = vunpack.c.l.b16 %v1949
        %v1973 = vunpack.c.l.b16 %v1950
        %v1974 = vpack.c.b16 %v1967, %v1966
        %v1975 = vpack.c.b16 %v1969, %v1968
        %v1976 = vpack.c.b16 %v1971, %v1970
        %v1977 = vpack.c.b16 %v1973, %v1972
        %vm1982 = vcmask 523264
        %v1984 = vsel %vm1982, %v1942, 0
        %1986 = vmatprep.subr.bf16.mxu0 0
        %1987 = vmatpush1.bf16.msra.mxu0 0
        %1988 = vmatprep.subr.bf16.mxu0 0
        %1989 = vmatpush1.bf16.msra.mxu0 0
        %1990 = vmatprep.subr.bf16.mxu0 0
        %1991 = vmatpush1.bf16.msra.mxu0 0
        %1992 = vmatprep.subr.bf16.mxu0 0
        %1993 = vmatpush1.bf16.msra.mxu0 0
        %1994 = vmatprep.subr.bf16.mxu0 0
        %1995 = vmatpush1.bf16.msra.mxu0 %v1977
        %1996 = vmatprep.subr.bf16.mxu0 0
        %1997 = vmatpush1.bf16.msra.mxu0 %v1976
        %1998 = vmatprep.subr.bf16.mxu0 0
        %1999 = vmatpush1.bf16.msra.mxu0 %v1975
        %2000 = vmatprep.subr.bf16.mxu0 0
        %2001 = vmatpush1.bf16.msra.mxu0 %v1974
        %2002 = vmatprep.subr.bf16.mxu0 0
        %2003 = vmatpush2.bf16.msra.mxu0 0
        %2004 = vmatprep.subr.bf16.mxu0 0
        %2005 = vmatpush2.bf16.msra.mxu0 0
        %2006 = vmatprep.subr.bf16.mxu0 0
        %2007 = vmatpush2.bf16.msra.mxu0 0
        %2008 = vmatprep.subr.bf16.mxu0 0
        %2009 = vmatpush2.bf16.msra.mxu0 0
        %2010 = vmatprep.subr.bf16.mxu0 0
        %2011 = vmatpush2.bf16.msra.mxu0 0
        %2012 = vmatprep.subr.bf16.mxu0 0
        %2013 = vmatpush2.bf16.msra.mxu0 0
        %2014 = vmatprep.subr.bf16.mxu0 0
        %2015 = vmatpush2.bf16.msra.mxu0 0
        %2016 = vmatprep.subr.bf16.mxu0 0
        %2017 = vmatpush2.bf16.msra.mxu0 0
        %2018 = vmatprep.mubr.bf16.mxu0 0
        %2019 = vmatmul.mubr.bf16.gmra.mxu0 %v1984
        %v2020 = vpop.f32.mrf.mxu0
        %v2021 = vadd.f32 %v1956, %v2020
        %v2022 = vpop.f32.mrf.mxu0
        %v2023 = vpop.f32.mrf.mxu0
        %v2024 = vadd.f32 %v1956, %v2023
        %v2025 = vpop.f32.mrf.mxu0
        %2026 = vdwg.mxu0
        %v2027 = vadd.f32 %v2021, %v1854
        %v2028 = vadd.f32 %v2024, %v1855
        %v2029 = vld [vmem:[%s687] sm:$0x1]
        %v2030 = vld [vmem:[%s690] sm:$0x1]
        %v2031 = vsel %vm728, %v2027, 0.0
        %2032 = vadd.xlane.f32.xlu0 %v2031
        %v2033 = vpop.xlane.xlu0 %2032
        %v2034 = vsel %vm728, %v2028, 0.0
        %2035 = vadd.xlane.f32.xlu0 %v2034
        %v2036 = vpop.xlane.xlu0 %2035
        %v2037 = vmul.f32 %v2033, %v1819
        %v2038 = vmul.f32 %v2036, %v1819
        %v2039 = vsub.f32 %v2027, %v2037
        %v2040 = vsub.f32 %v2028, %v2038
        %v2041 = vmul.f32 %v2039, %v2039
        %v2042 = vmul.f32 %v2040, %v2040
        %v2043 = vsel %vm728, %v2041, 0.0
        %2044 = vadd.xlane.f32.xlu0 %v2043
        %v2045 = vpop.xlane.xlu0 %2044
        %v2046 = vsel %vm728, %v2042, 0.0
        %2047 = vadd.xlane.f32.xlu0 %v2046
        %v2048 = vpop.xlane.xlu0 %2047
        %v2049 = vmul.f32 %v2045, %v1819
        %v2050 = vmul.f32 %v2048, %v1819
        %v2051 = vadd.f32 %v2049, 1e-12
        %v2052 = vadd.f32 %v2050, 1e-12
        %v2053 = vrsqrt.pop %v2051
        %v2054 = vrsqrt.pop %v2052
        %v2055 = vmul.f32 %v2039, %v2053
        %v2056 = vmul.f32 %v2040, %v2054
        %v2058 = vlaneseq
        %v2059 = vshrl.u32 %v2058, 7
        %v2060 = vsub.s32 0, %v2059
        %v2061 = vrot.slane %v2029, %v2060
        %v2063 = vmul.f32 %v2055, %v2061
        %v2064 = vmul.f32 %v2056, %v2061
        %v2066 = vlaneseq
        %v2067 = vshrl.u32 %v2066, 7
        %v2068 = vsub.s32 0, %v2067
        %v2069 = vrot.slane %v2030, %v2068
        %v2071 = vadd.f32 %v2063, %v2069
        %v2072 = vadd.f32 %v2064, %v2069
        %2073 = vst.msk [vmem:[#allocation8] sm:$0xff] %vm728, %v2071
        %2074 = vst.msk [vmem:[#allocation8 + $0x8] sm:$0xff] %vm728, %v2072
        // Predicated region
        $region89: #{tpu_custom_call.1} parent=75 // pred_check
          %p2075 = pneg %p422
        $region90: #{tpu_custom_call.1} parent=75 // pred_check_branch
          %2077 = sbr.rel (%p2075) target = $region92
        $region91: #{tpu_custom_call.1} parent=75 // pred_region
          %s2078 = smul.u32 2, %s32
          %s2080 = ssub.s32 256, 256
          %2081 = vsyncadd [#allocation5], %s2080
          %s2082 = smul.addr %s2078, 128
          %s2083 = scalar_lea.hbm %s14, %s2082
          %s2084 = sshll.u32 [#allocation8], 4
          %s2085 = int_to_ptr.vmem [resolvable:$true] %s2084
          %2090 = dma.vmem_to_hbm [thread:$0]  %s2085, 256, %s2083, [#allocation5], 128, 128, 8
        $region92: #{tpu_custom_call.1} parent=75 // pred_fallthru
          _
        // Predicated region
        $region93: #{tpu_custom_call.1} parent=75 // pred_check
          %p2091 = pneg %p422
        $region94: #{tpu_custom_call.1} parent=75 // pred_check_branch
          %2093 = sbr.rel (%p2091) target = $region96
        $region95: #{tpu_custom_call.1} parent=75 // pred_region
          %2094 = dma.done [#allocation5], 256
        $region96: #{tpu_custom_call.1} parent=75 // pred_fallthru
          _
      $region76: #{tpu_custom_call.1} parent=5 // pred_fallthru
        _
      %p2095 = scmp.le.s32.totalorder 2, %s23
      // Predicated region
      $region97: #{tpu_custom_call.1} parent=5 // pred_check
        %p2096 = pneg %p2095
      $region98: #{tpu_custom_call.1} parent=5 // pred_check_branch
        %2098 = sbr.rel (%p2096) target = $region100
      $region99: #{tpu_custom_call.1} parent=5 // pred_region
        %s2099 = ssub.s32 %s23, 2
      $region100: #{tpu_custom_call.1} parent=5 // pred_fallthru
        _
    $region6: #{tpu_custom_call.1} parent=1 // loop_footer
      %s27 = sadd.s32 1, %s23
    $region7: #{tpu_custom_call.1} parent=1 // loop_footer_branch
      %22 = sbr.rel target = $region3
    $region8: #{tpu_custom_call.1} parent=1 // loop_exit
      _
    %2100 = vsyncpa [#allocation4], 1
    %s2101 = scalar_lea.sflag [#allocation4], 1
    %2102 = vsyncpa %s2101, 1
    %2103 = vsyncpa [#allocation7], 1
    %2104 = vsyncpa [#allocation5], 1
    %s2105 = scalar_lea.sflag [#allocation5], 1
    %2106 = vsyncpa %s2105, 1

</llo_original>
